<compile_context>
chip_gen: v6e
topology: v6e:2x2x1
jax: 0.10.0
libtpu: 0.0.40
codegen_flags: <defaults>
</compile_context>

<pallas_src>
import jax
import jax.numpy as jnp
from jax.experimental import pallas as pl
from jax.experimental.pallas import tpu as pltpu

_LANE = 128


def _round_up(n, m):
    return (n + m - 1) // m * m


def _encoder_kernel(x_ref, wih_ref, whh_ref, b_ref, wlin_ref, blin_ref,
                    lstm_out_ref, h_n_ref, c_n_ref, out_ref, h_acc_ref):
    """Full-sequence LSTM + Linear for one batch block (single grid step).

    x_ref:        (B, T, D)      f32 batch_first input
    wih_ref:      (D, 4Hp)       bf16  W_ih^T   (gate-blockwise lane-padded)
    whh_ref:      (Hp, 4Hp)      bf16  W_hh^T
    b_ref:        (1, 4Hp)       f32   b_ih + b_hh
    wlin_ref:     (Hp, Ep)       bf16  linear weight^T
    blin_ref:     (1, Ep)        f32   linear bias
    lstm_out_ref: (B, T, Hp)     f32   all hidden states
    h_n_ref:      (1, B, Hp)     f32   final hidden state
    c_n_ref:      (1, B, Hp)     f32   final cell state
    out_ref:      (B, T, Ep)     f32   linear(lstm_out)
    h_acc_ref:    (B, T, Hp)     f32   VMEM scratch for per-step hidden states
    """
    B, T, D = x_ref.shape
    Hp = whh_ref.shape[0]
    Ep = wlin_ref.shape[1]

    # ---- 1) hoisted input projection: ONE bf16 MXU GEMM over all timesteps ----
    x_all = x_ref[...].reshape(B * T, D).astype(jnp.bfloat16)        # cast once
    gates_x = (jnp.dot(x_all, wih_ref[...],
                       preferred_element_type=jnp.float32)
               + b_ref[...]).reshape(B, T, 4 * Hp)                   # (B,T,4Hp) f32

    # ---- 2) recurrence: only h @ W_hh^T on the serial path --------------------
    w_hh = whh_ref[...]                                              # (Hp,4Hp) bf16
    h = jnp.zeros((B, Hp), jnp.float32)
    c = jnp.zeros((B, Hp), jnp.float32)
    for t in range(T):                       # T is a compile-time constant (8)
        g = gates_x[:, t, :] + jnp.dot(h.astype(jnp.bfloat16), w_hh,
                                       preferred_element_type=jnp.float32)
        # PyTorch LSTM gate ordering: i, f, g, o  (whole-vreg slices, f32 math)
        i_g = jax.nn.sigmoid(g[:, 0 * Hp:1 * Hp])
        f_g = jax.nn.sigmoid(g[:, 1 * Hp:2 * Hp])
        g_g = jnp.tanh(g[:, 2 * Hp:3 * Hp])
        o_g = jax.nn.sigmoid(g[:, 3 * Hp:4 * Hp])
        c = f_g * c + i_g * g_g
        h = o_g * jnp.tanh(c)
        # lane-dense (Hp=128) store into f32 VMEM scratch
        h_acc_ref[:, pl.ds(t, 1), :] = h[:, None, :]

    # final states written exactly once
    h_n_ref[0] = h.astype(h_n_ref.dtype)
    c_n_ref[0] = c.astype(c_n_ref.dtype)

    # ---- 3) single contiguous lstm_out writeback + hoisted output Linear ------
    lstm_all = h_acc_ref[...]                                        # (B,T,Hp) f32
    lstm_out_ref[...] = lstm_all.astype(lstm_out_ref.dtype)
    out = (jnp.dot(lstm_all.reshape(B * T, Hp).astype(jnp.bfloat16),
                   wlin_ref[...], preferred_element_type=jnp.float32)
           + blin_ref[...])
    out_ref[...] = out.reshape(B, T, Ep).astype(out_ref.dtype)


def encoder_forward(x, packed):
    """x: (B, T, input_size) f32.  Returns (lstm_out, (h_n, c_n), output)."""
    B, T, D = x.shape
    H = packed["hidden_size"]
    E = packed["embedding_size"]
    Hp = packed["w_hh_t"].shape[0]
    Ep = packed["w_lin_t"].shape[1]

    lstm_out, h_n, c_n, output = pl.pallas_call(
        _encoder_kernel,
        out_shape=(
            jax.ShapeDtypeStruct((B, T, Hp), jnp.float32),   # lstm_out (padded)
            jax.ShapeDtypeStruct((1, B, Hp), jnp.float32),   # h_n      (padded)
            jax.ShapeDtypeStruct((1, B, Hp), jnp.float32),   # c_n      (padded)
            jax.ShapeDtypeStruct((B, T, Ep), jnp.float32),   # output   (padded)
        ),
        grid_spec=pltpu.PrefetchScalarGridSpec(
            num_scalar_prefetch=0,
            grid=(1,),   # single block: B=2 per core; recurrence is latency-bound
            in_specs=[
                pl.BlockSpec((B, T, D), lambda b: (b, 0, 0)),     # x
                pl.BlockSpec((D, 4 * Hp), lambda b: (0, 0)),      # W_ih^T (bf16)
                pl.BlockSpec((Hp, 4 * Hp), lambda b: (0, 0)),     # W_hh^T (bf16)
                pl.BlockSpec((1, 4 * Hp), lambda b: (0, 0)),      # gate bias
                pl.BlockSpec((Hp, Ep), lambda b: (0, 0)),         # W_lin^T (bf16)
                pl.BlockSpec((1, Ep), lambda b: (0, 0)),          # b_lin
            ],
            out_specs=[
                pl.BlockSpec((B, T, Hp), lambda b: (b, 0, 0)),    # lstm_out
                pl.BlockSpec((1, B, Hp), lambda b: (0, b, 0)),    # h_n
                pl.BlockSpec((1, B, Hp), lambda b: (0, b, 0)),    # c_n
                pl.BlockSpec((B, T, Ep), lambda b: (b, 0, 0)),    # output
            ],
            scratch_shapes=[pltpu.VMEM((B, T, Hp), jnp.float32)],  # h history
        ),
        compiler_params=pltpu.CompilerParams(
            dimension_semantics=("parallel",)),
    )(x, packed["w_ih_t"], packed["w_hh_t"], packed["b_gates"],
      packed["w_lin_t"], packed["b_lin"])

    # padded columns are exactly zero by construction; slice them off
    return (lstm_out[..., :H], (h_n[..., :H], c_n[..., :H]), output[..., :E])


def init_params(key, input_size, hidden_size, embedding_size):
    """PyTorch-shaped f32 parameters (uniform(-1/sqrt(H), 1/sqrt(H)))."""
    ks = jax.random.split(key, 6)
    k = 1.0 / jnp.sqrt(hidden_size)
    u = lambda kk, shape: jax.random.uniform(kk, shape, jnp.float32, -k, k)
    return {
        "w_ih": u(ks[0], (4 * hidden_size, input_size)),     # weight_ih_l0
        "w_hh": u(ks[1], (4 * hidden_size, hidden_size)),    # weight_hh_l0
        "b_ih": u(ks[2], (4 * hidden_size,)),
        "b_hh": u(ks[3], (4 * hidden_size,)),
        "w_lin": u(ks[4], (embedding_size, hidden_size)),    # Linear.weight
        "b_lin": u(ks[5], (embedding_size,)),
    }


def pack_params(raw, input_size, hidden_size, embedding_size):
    """Pad H/E (gate-blockwise for 4H) to 128 lanes, transpose, cast weights to bf16."""
    Hp = _round_up(hidden_size, _LANE)
    Ep = _round_up(embedding_size, _LANE)
    dh = Hp - hidden_size

    def pad_gate_rows(w):                 # (4H, X) -> (4Hp, X), per-gate padding
        X = w.shape[1]
        w4 = w.reshape(4, hidden_size, X)
        return jnp.pad(w4, ((0, 0), (0, dh), (0, 0))).reshape(4 * Hp, X)

    w_ih_p = pad_gate_rows(raw["w_ih"])                                # (4Hp, D)
    w_hh_p = jnp.pad(pad_gate_rows(raw["w_hh"]), ((0, 0), (0, dh)))    # (4Hp, Hp)
    b_p = jnp.pad((raw["b_ih"] + raw["b_hh"]).reshape(4, hidden_size),
                  ((0, 0), (0, dh))).reshape(4 * Hp)                   # (4Hp,)
    w_lin_p = jnp.pad(raw["w_lin"],
                      ((0, Ep - embedding_size), (0, dh)))             # (Ep, Hp)
    b_lin_p = jnp.pad(raw["b_lin"], ((0, Ep - embedding_size),))       # (Ep,)

    return {
        "w_ih_t": w_ih_p.T.astype(jnp.bfloat16),       # (D, 4Hp)
        "w_hh_t": w_hh_p.T.astype(jnp.bfloat16),       # (Hp, 4Hp)
        "b_gates": b_p[None, :].astype(jnp.float32),   # (1, 4Hp)
        "w_lin_t": w_lin_p.T.astype(jnp.bfloat16),     # (Hp, Ep)
        "b_lin": b_lin_p[None, :].astype(jnp.float32), # (1, Ep)
        "hidden_size": hidden_size,
        "embedding_size": embedding_size,
    }


def encoder_reference(x, raw, hidden_size):
    """Pure-JAX f32 reference implementing the original PyTorch semantics."""
    B, T, D = x.shape
    H = hidden_size
    w_ih_t = raw["w_ih"].T                   # (D, 4H)
    w_hh_t = raw["w_hh"].T                   # (H, 4H)
    b = raw["b_ih"] + raw["b_hh"]

    def step(carry, x_t):
        h, c = carry
        gates = x_t @ w_ih_t + h @ w_hh_t + b
        i = jax.nn.sigmoid(gates[:, 0 * H:1 * H])
        f = jax.nn.sigmoid(gates[:, 1 * H:2 * H])
        g = jnp.tanh(gates[:, 2 * H:3 * H])
        o = jax.nn.sigmoid(gates[:, 3 * H:4 * H])
        c_new = f * c + i * g
        h_new = o * jnp.tanh(c_new)
        return (h_new, c_new), h_new

    h0 = jnp.zeros((B, H), jnp.float32)
    c0 = jnp.zeros((B, H), jnp.float32)
    (h_n, c_n), hs = jax.lax.scan(step, (h0, c0), jnp.transpose(x, (1, 0, 2)))
    lstm_out = jnp.transpose(hs, (1, 0, 2))
    output = lstm_out @ raw["w_lin"].T + raw["b_lin"]
    return lstm_out, (h_n[None], c_n[None]), output


if __name__ == "__main__":
    B, T = 2, 8
    input_size, hidden_size, embedding_size = 4, 32, 16

    key = jax.random.PRNGKey(0)
    k_x, k_p = jax.random.split(key)
    x = jax.random.normal(k_x, (B, T, input_size), jnp.float32)
    raw = init_params(k_p, input_size, hidden_size, embedding_size)
    packed = pack_params(raw, input_size, hidden_size, embedding_size)

    lstm_out, (h_n, c_n), output = encoder_forward(x, packed)
    jax.block_until_ready((lstm_out, h_n, c_n, output))

    # shape checks (match the PyTorch module)
    assert lstm_out.shape == (B, T, hidden_size)
    assert h_n.shape == (1, B, hidden_size) and c_n.shape == (1, B, hidden_size)
    assert output.shape == (B, T, embedding_size)

    # numeric check vs pure-f32 reference (tolerance covers bf16 weight storage)
    ref_lstm_out, (ref_h, ref_c), ref_out = encoder_reference(x, raw, hidden_size)
    assert jnp.allclose(lstm_out, ref_lstm_out, atol=5e-2)
    assert jnp.allclose(h_n, ref_h, atol=5e-2)
    assert jnp.allclose(c_n, ref_c, atol=5e-2)
    assert jnp.allclose(output, ref_out, atol=5e-2)

    print("KERNEL_OK")
</pallas_src>

<mosaic_0001>
module attributes {stable_mosaic.version = 11 : i64} {
  func.func @_encoder_kernel(%arg0: i32, %arg1: memref<2x8x4xf32, #tpu.memory_space<vmem>>, %arg2: memref<4x512xbf16, #tpu.memory_space<vmem>>, %arg3: memref<128x512xbf16, #tpu.memory_space<vmem>>, %arg4: memref<1x512xf32, #tpu.memory_space<vmem>>, %arg5: memref<128x128xbf16, #tpu.memory_space<vmem>>, %arg6: memref<1x128xf32, #tpu.memory_space<vmem>>, %arg7: memref<2x8x128xf32, #tpu.memory_space<vmem>>, %arg8: memref<1x2x128xf32, #tpu.memory_space<vmem>>, %arg9: memref<1x2x128xf32, #tpu.memory_space<vmem>>, %arg10: memref<2x8x128xf32, #tpu.memory_space<vmem>>, %arg11: memref<2x8x128xf32, #tpu.memory_space<vmem>>) attributes {dimension_semantics = [#tpu.dimension_semantics<parallel>], iteration_bounds = array<i64: 1>, scalar_prefetch = 0 : i64, scratch_operands = 1 : i64, tpu.core_type = #tpu.core_type<tc>, window_params = [{transform_indices = @transform_0, window_bounds = array<i64: 2, 8, 4>}, {pipeline_mode = #tpu.pipeline_mode<synchronous>, transform_indices = @transform_1, window_bounds = array<i64: 4, 512>}, {pipeline_mode = #tpu.pipeline_mode<synchronous>, transform_indices = @transform_2, window_bounds = array<i64: 128, 512>}, {pipeline_mode = #tpu.pipeline_mode<synchronous>, transform_indices = @transform_3, window_bounds = array<i64: 1, 512>}, {pipeline_mode = #tpu.pipeline_mode<synchronous>, transform_indices = @transform_4, window_bounds = array<i64: 128, 128>}, {pipeline_mode = #tpu.pipeline_mode<synchronous>, transform_indices = @transform_5, window_bounds = array<i64: 1, 128>}, {transform_indices = @transform_6, window_bounds = array<i64: 2, 8, 128>}, {transform_indices = @transform_7, window_bounds = array<i64: 1, 2, 128>}, {transform_indices = @transform_8, window_bounds = array<i64: 1, 2, 128>}, {transform_indices = @transform_9, window_bounds = array<i64: 2, 8, 128>}]} {
    %c0 = arith.constant 0 : index
    %c0_0 = arith.constant 0 : index
    %c0_1 = arith.constant 0 : index
    %0 = vector.load %arg1[%c0, %c0_0, %c0_1] : memref<2x8x4xf32, #tpu.memory_space<vmem>>, vector<2x8x4xf32>
    %1 = vector.shape_cast %0 : vector<2x8x4xf32> to vector<16x4xf32>
    %2 = arith.truncf %1 : vector<16x4xf32> to vector<16x4xbf16>
    %c0_2 = arith.constant 0 : index
    %c0_3 = arith.constant 0 : index
    %3 = vector.load %arg2[%c0_2, %c0_3] : memref<4x512xbf16, #tpu.memory_space<vmem>>, vector<4x512xbf16>
    %cst = arith.constant dense<0.000000e+00> : vector<16x512xf32>
    %4 = tpu.matmul %2, %3, %cst {dimension_numbers = #tpu.dot_dimension_numbers<[1], [0], [0], [1], [0, 0, 1, 1], [], []>} : vector<16x4xbf16>, vector<4x512xbf16>, vector<16x512xf32> -> vector<16x512xf32>
    %c0_4 = arith.constant 0 : index
    %c0_5 = arith.constant 0 : index
    %5 = vector.load %arg4[%c0_4, %c0_5] : memref<1x512xf32, #tpu.memory_space<vmem>>, vector<1x512xf32>
    %6 = vector.broadcast %5 : vector<1x512xf32> to vector<16x512xf32>
    %7 = arith.addf %4, %6 : vector<16x512xf32>
    %8 = vector.shape_cast %7 : vector<16x512xf32> to vector<2x8x512xf32>
    %c0_6 = arith.constant 0 : index
    %c0_7 = arith.constant 0 : index
    %9 = vector.load %arg3[%c0_6, %c0_7] : memref<128x512xbf16, #tpu.memory_space<vmem>>, vector<128x512xbf16>
    %cst_8 = arith.constant 0.000000e+00 : f32
    %10 = vector.broadcast %cst_8 : f32 to vector<2x128xf32>
    %cst_9 = arith.constant 0.000000e+00 : f32
    %11 = vector.broadcast %cst_9 : f32 to vector<2x128xf32>
    %12 = vector.extract_strided_slice %8 {offsets = [0, 0, 0], sizes = [2, 1, 512], strides = [1, 1, 1]} : vector<2x8x512xf32> to vector<2x1x512xf32>
    %13 = vector.shape_cast %12 : vector<2x1x512xf32> to vector<2x512xf32>
    %14 = arith.truncf %10 : vector<2x128xf32> to vector<2x128xbf16>
    %cst_10 = arith.constant dense<0.000000e+00> : vector<2x512xf32>
    %15 = tpu.matmul %14, %9, %cst_10 {dimension_numbers = #tpu.dot_dimension_numbers<[1], [0], [0], [1], [0, 0, 1, 1], [], []>} : vector<2x128xbf16>, vector<128x512xbf16>, vector<2x512xf32> -> vector<2x512xf32>
    %16 = arith.addf %13, %15 : vector<2x512xf32>
    %17 = vector.extract_strided_slice %16 {offsets = [0, 0], sizes = [2, 128], strides = [1, 1]} : vector<2x512xf32> to vector<2x128xf32>
    %18 = arith.negf %17 : vector<2x128xf32>
    %19 = math.exp %18 : vector<2x128xf32>
    %cst_11 = arith.constant 1.000000e+00 : f32
    %20 = vector.broadcast %cst_11 : f32 to vector<2x128xf32>
    %21 = arith.addf %20, %19 : vector<2x128xf32>
    %22 = arith.divf %20, %21 : vector<2x128xf32>
    %23 = vector.extract_strided_slice %16 {offsets = [0, 128], sizes = [2, 128], strides = [1, 1]} : vector<2x512xf32> to vector<2x128xf32>
    %24 = arith.negf %23 : vector<2x128xf32>
    %25 = math.exp %24 : vector<2x128xf32>
    %cst_12 = arith.constant 1.000000e+00 : f32
    %26 = vector.broadcast %cst_12 : f32 to vector<2x128xf32>
    %27 = arith.addf %26, %25 : vector<2x128xf32>
    %28 = arith.divf %26, %27 : vector<2x128xf32>
    %29 = vector.extract_strided_slice %16 {offsets = [0, 256], sizes = [2, 128], strides = [1, 1]} : vector<2x512xf32> to vector<2x128xf32>
    %30 = math.tanh %29 : vector<2x128xf32>
    %31 = vector.extract_strided_slice %16 {offsets = [0, 384], sizes = [2, 128], strides = [1, 1]} : vector<2x512xf32> to vector<2x128xf32>
    %32 = arith.negf %31 : vector<2x128xf32>
    %33 = math.exp %32 : vector<2x128xf32>
    %cst_13 = arith.constant 1.000000e+00 : f32
    %34 = vector.broadcast %cst_13 : f32 to vector<2x128xf32>
    %35 = arith.addf %34, %33 : vector<2x128xf32>
    %36 = arith.divf %34, %35 : vector<2x128xf32>
    %37 = arith.mulf %28, %11 : vector<2x128xf32>
    %38 = arith.mulf %22, %30 : vector<2x128xf32>
    %39 = arith.addf %37, %38 : vector<2x128xf32>
    %40 = math.tanh %39 : vector<2x128xf32>
    %41 = arith.mulf %36, %40 : vector<2x128xf32>
    %42 = vector.shape_cast %41 : vector<2x128xf32> to vector<2x1x128xf32>
    %c0_14 = arith.constant 0 : index
    %c0_15 = arith.constant 0 : index
    %c0_16 = arith.constant 0 : index
    %43 = vector.load %arg11[%c0_14, %c0_15, %c0_16] : memref<2x8x128xf32, #tpu.memory_space<vmem>>, vector<2x1x128xf32>
    tpu.vector_store %arg11[%c0_14, %c0_15, %c0_16], %42 {strides = array<i32>} : memref<2x8x128xf32, #tpu.memory_space<vmem>>, vector<2x1x128xf32>,
    %44 = vector.extract_strided_slice %8 {offsets = [0, 1, 0], sizes = [2, 1, 512], strides = [1, 1, 1]} : vector<2x8x512xf32> to vector<2x1x512xf32>
    %45 = vector.shape_cast %44 : vector<2x1x512xf32> to vector<2x512xf32>
    %46 = arith.truncf %41 : vector<2x128xf32> to vector<2x128xbf16>
    %cst_17 = arith.constant dense<0.000000e+00> : vector<2x512xf32>
    %47 = tpu.matmul %46, %9, %cst_17 {dimension_numbers = #tpu.dot_dimension_numbers<[1], [0], [0], [1], [0, 0, 1, 1], [], []>} : vector<2x128xbf16>, vector<128x512xbf16>, vector<2x512xf32> -> vector<2x512xf32>
    %48 = arith.addf %45, %47 : vector<2x512xf32>
    %49 = vector.extract_strided_slice %48 {offsets = [0, 0], sizes = [2, 128], strides = [1, 1]} : vector<2x512xf32> to vector<2x128xf32>
    %50 = arith.negf %49 : vector<2x128xf32>
    %51 = math.exp %50 : vector<2x128xf32>
    %cst_18 = arith.constant 1.000000e+00 : f32
    %52 = vector.broadcast %cst_18 : f32 to vector<2x128xf32>
    %53 = arith.addf %52, %51 : vector<2x128xf32>
    %54 = arith.divf %52, %53 : vector<2x128xf32>
    %55 = vector.extract_strided_slice %48 {offsets = [0, 128], sizes = [2, 128], strides = [1, 1]} : vector<2x512xf32> to vector<2x128xf32>
    %56 = arith.negf %55 : vector<2x128xf32>
    %57 = math.exp %56 : vector<2x128xf32>
    %cst_19 = arith.constant 1.000000e+00 : f32
    %58 = vector.broadcast %cst_19 : f32 to vector<2x128xf32>
    %59 = arith.addf %58, %57 : vector<2x128xf32>
    %60 = arith.divf %58, %59 : vector<2x128xf32>
    %61 = vector.extract_strided_slice %48 {offsets = [0, 256], sizes = [2, 128], strides = [1, 1]} : vector<2x512xf32> to vector<2x128xf32>
    %62 = math.tanh %61 : vector<2x128xf32>
    %63 = vector.extract_strided_slice %48 {offsets = [0, 384], sizes = [2, 128], strides = [1, 1]} : vector<2x512xf32> to vector<2x128xf32>
    %64 = arith.negf %63 : vector<2x128xf32>
    %65 = math.exp %64 : vector<2x128xf32>
    %cst_20 = arith.constant 1.000000e+00 : f32
    %66 = vector.broadcast %cst_20 : f32 to vector<2x128xf32>
    %67 = arith.addf %66, %65 : vector<2x128xf32>
    %68 = arith.divf %66, %67 : vector<2x128xf32>
    %69 = arith.mulf %60, %39 : vector<2x128xf32>
    %70 = arith.mulf %54, %62 : vector<2x128xf32>
    %71 = arith.addf %69, %70 : vector<2x128xf32>
    %72 = math.tanh %71 : vector<2x128xf32>
    %73 = arith.mulf %68, %72 : vector<2x128xf32>
    %74 = vector.shape_cast %73 : vector<2x128xf32> to vector<2x1x128xf32>
    %c0_21 = arith.constant 0 : index
    %c1 = arith.constant 1 : index
    %c0_22 = arith.constant 0 : index
    %75 = vector.load %arg11[%c0_21, %c1, %c0_22] : memref<2x8x128xf32, #tpu.memory_space<vmem>>, vector<2x1x128xf32>
    tpu.vector_store %arg11[%c0_21, %c1, %c0_22], %74 {strides = array<i32>} : memref<2x8x128xf32, #tpu.memory_space<vmem>>, vector<2x1x128xf32>,
    %76 = vector.extract_strided_slice %8 {offsets = [0, 2, 0], sizes = [2, 1, 512], strides = [1, 1, 1]} : vector<2x8x512xf32> to vector<2x1x512xf32>
    %77 = vector.shape_cast %76 : vector<2x1x512xf32> to vector<2x512xf32>
    %78 = arith.truncf %73 : vector<2x128xf32> to vector<2x128xbf16>
    %cst_23 = arith.constant dense<0.000000e+00> : vector<2x512xf32>
    %79 = tpu.matmul %78, %9, %cst_23 {dimension_numbers = #tpu.dot_dimension_numbers<[1], [0], [0], [1], [0, 0, 1, 1], [], []>} : vector<2x128xbf16>, vector<128x512xbf16>, vector<2x512xf32> -> vector<2x512xf32>
    %80 = arith.addf %77, %79 : vector<2x512xf32>
    %81 = vector.extract_strided_slice %80 {offsets = [0, 0], sizes = [2, 128], strides = [1, 1]} : vector<2x512xf32> to vector<2x128xf32>
    %82 = arith.negf %81 : vector<2x128xf32>
    %83 = math.exp %82 : vector<2x128xf32>
    %cst_24 = arith.constant 1.000000e+00 : f32
    %84 = vector.broadcast %cst_24 : f32 to vector<2x128xf32>
    %85 = arith.addf %84, %83 : vector<2x128xf32>
    %86 = arith.divf %84, %85 : vector<2x128xf32>
    %87 = vector.extract_strided_slice %80 {offsets = [0, 128], sizes = [2, 128], strides = [1, 1]} : vector<2x512xf32> to vector<2x128xf32>
    %88 = arith.negf %87 : vector<2x128xf32>
    %89 = math.exp %88 : vector<2x128xf32>
    %cst_25 = arith.constant 1.000000e+00 : f32
    %90 = vector.broadcast %cst_25 : f32 to vector<2x128xf32>
    %91 = arith.addf %90, %89 : vector<2x128xf32>
    %92 = arith.divf %90, %91 : vector<2x128xf32>
    %93 = vector.extract_strided_slice %80 {offsets = [0, 256], sizes = [2, 128], strides = [1, 1]} : vector<2x512xf32> to vector<2x128xf32>
    %94 = math.tanh %93 : vector<2x128xf32>
    %95 = vector.extract_strided_slice %80 {offsets = [0, 384], sizes = [2, 128], strides = [1, 1]} : vector<2x512xf32> to vector<2x128xf32>
    %96 = arith.negf %95 : vector<2x128xf32>
    %97 = math.exp %96 : vector<2x128xf32>
    %cst_26 = arith.constant 1.000000e+00 : f32
    %98 = vector.broadcast %cst_26 : f32 to vector<2x128xf32>
    %99 = arith.addf %98, %97 : vector<2x128xf32>
    %100 = arith.divf %98, %99 : vector<2x128xf32>
    %101 = arith.mulf %92, %71 : vector<2x128xf32>
    %102 = arith.mulf %86, %94 : vector<2x128xf32>
    %103 = arith.addf %101, %102 : vector<2x128xf32>
    %104 = math.tanh %103 : vector<2x128xf32>
    %105 = arith.mulf %100, %104 : vector<2x128xf32>
    %106 = vector.shape_cast %105 : vector<2x128xf32> to vector<2x1x128xf32>
    %c0_27 = arith.constant 0 : index
    %c2 = arith.constant 2 : index
    %c0_28 = arith.constant 0 : index
    %107 = vector.load %arg11[%c0_27, %c2, %c0_28] : memref<2x8x128xf32, #tpu.memory_space<vmem>>, vector<2x1x128xf32>
    tpu.vector_store %arg11[%c0_27, %c2, %c0_28], %106 {strides = array<i32>} : memref<2x8x128xf32, #tpu.memory_space<vmem>>, vector<2x1x128xf32>,
    %108 = vector.extract_strided_slice %8 {offsets = [0, 3, 0], sizes = [2, 1, 512], strides = [1, 1, 1]} : vector<2x8x512xf32> to vector<2x1x512xf32>
    %109 = vector.shape_cast %108 : vector<2x1x512xf32> to vector<2x512xf32>
    %110 = arith.truncf %105 : vector<2x128xf32> to vector<2x128xbf16>
    %cst_29 = arith.constant dense<0.000000e+00> : vector<2x512xf32>
    %111 = tpu.matmul %110, %9, %cst_29 {dimension_numbers = #tpu.dot_dimension_numbers<[1], [0], [0], [1], [0, 0, 1, 1], [], []>} : vector<2x128xbf16>, vector<128x512xbf16>, vector<2x512xf32> -> vector<2x512xf32>
    %112 = arith.addf %109, %111 : vector<2x512xf32>
    %113 = vector.extract_strided_slice %112 {offsets = [0, 0], sizes = [2, 128], strides = [1, 1]} : vector<2x512xf32> to vector<2x128xf32>
    %114 = arith.negf %113 : vector<2x128xf32>
    %115 = math.exp %114 : vector<2x128xf32>
    %cst_30 = arith.constant 1.000000e+00 : f32
    %116 = vector.broadcast %cst_30 : f32 to vector<2x128xf32>
    %117 = arith.addf %116, %115 : vector<2x128xf32>
    %118 = arith.divf %116, %117 : vector<2x128xf32>
    %119 = vector.extract_strided_slice %112 {offsets = [0, 128], sizes = [2, 128], strides = [1, 1]} : vector<2x512xf32> to vector<2x128xf32>
    %120 = arith.negf %119 : vector<2x128xf32>
    %121 = math.exp %120 : vector<2x128xf32>
    %cst_31 = arith.constant 1.000000e+00 : f32
    %122 = vector.broadcast %cst_31 : f32 to vector<2x128xf32>
    %123 = arith.addf %122, %121 : vector<2x128xf32>
    %124 = arith.divf %122, %123 : vector<2x128xf32>
    %125 = vector.extract_strided_slice %112 {offsets = [0, 256], sizes = [2, 128], strides = [1, 1]} : vector<2x512xf32> to vector<2x128xf32>
    %126 = math.tanh %125 : vector<2x128xf32>
    %127 = vector.extract_strided_slice %112 {offsets = [0, 384], sizes = [2, 128], strides = [1, 1]} : vector<2x512xf32> to vector<2x128xf32>
    %128 = arith.negf %127 : vector<2x128xf32>
    %129 = math.exp %128 : vector<2x128xf32>
    %cst_32 = arith.constant 1.000000e+00 : f32
    %130 = vector.broadcast %cst_32 : f32 to vector<2x128xf32>
    %131 = arith.addf %130, %129 : vector<2x128xf32>
    %132 = arith.divf %130, %131 : vector<2x128xf32>
    %133 = arith.mulf %124, %103 : vector<2x128xf32>
    %134 = arith.mulf %118, %126 : vector<2x128xf32>
    %135 = arith.addf %133, %134 : vector<2x128xf32>
    %136 = math.tanh %135 : vector<2x128xf32>
    %137 = arith.mulf %132, %136 : vector<2x128xf32>
    %138 = vector.shape_cast %137 : vector<2x128xf32> to vector<2x1x128xf32>
    %c0_33 = arith.constant 0 : index
    %c3 = arith.constant 3 : index
    %c0_34 = arith.constant 0 : index
    %139 = vector.load %arg11[%c0_33, %c3, %c0_34] : memref<2x8x128xf32, #tpu.memory_space<vmem>>, vector<2x1x128xf32>
    tpu.vector_store %arg11[%c0_33, %c3, %c0_34], %138 {strides = array<i32>} : memref<2x8x128xf32, #tpu.memory_space<vmem>>, vector<2x1x128xf32>,
    %140 = vector.extract_strided_slice %8 {offsets = [0, 4, 0], sizes = [2, 1, 512], strides = [1, 1, 1]} : vector<2x8x512xf32> to vector<2x1x512xf32>
    %141 = vector.shape_cast %140 : vector<2x1x512xf32> to vector<2x512xf32>
    %142 = arith.truncf %137 : vector<2x128xf32> to vector<2x128xbf16>
    %cst_35 = arith.constant dense<0.000000e+00> : vector<2x512xf32>
    %143 = tpu.matmul %142, %9, %cst_35 {dimension_numbers = #tpu.dot_dimension_numbers<[1], [0], [0], [1], [0, 0, 1, 1], [], []>} : vector<2x128xbf16>, vector<128x512xbf16>, vector<2x512xf32> -> vector<2x512xf32>
    %144 = arith.addf %141, %143 : vector<2x512xf32>
    %145 = vector.extract_strided_slice %144 {offsets = [0, 0], sizes = [2, 128], strides = [1, 1]} : vector<2x512xf32> to vector<2x128xf32>
    %146 = arith.negf %145 : vector<2x128xf32>
    %147 = math.exp %146 : vector<2x128xf32>
    %cst_36 = arith.constant 1.000000e+00 : f32
    %148 = vector.broadcast %cst_36 : f32 to vector<2x128xf32>
    %149 = arith.addf %148, %147 : vector<2x128xf32>
    %150 = arith.divf %148, %149 : vector<2x128xf32>
    %151 = vector.extract_strided_slice %144 {offsets = [0, 128], sizes = [2, 128], strides = [1, 1]} : vector<2x512xf32> to vector<2x128xf32>
    %152 = arith.negf %151 : vector<2x128xf32>
    %153 = math.exp %152 : vector<2x128xf32>
    %cst_37 = arith.constant 1.000000e+00 : f32
    %154 = vector.broadcast %cst_37 : f32 to vector<2x128xf32>
    %155 = arith.addf %154, %153 : vector<2x128xf32>
    %156 = arith.divf %154, %155 : vector<2x128xf32>
    %157 = vector.extract_strided_slice %144 {offsets = [0, 256], sizes = [2, 128], strides = [1, 1]} : vector<2x512xf32> to vector<2x128xf32>
    %158 = math.tanh %157 : vector<2x128xf32>
    %159 = vector.extract_strided_slice %144 {offsets = [0, 384], sizes = [2, 128], strides = [1, 1]} : vector<2x512xf32> to vector<2x128xf32>
    %160 = arith.negf %159 : vector<2x128xf32>
    %161 = math.exp %160 : vector<2x128xf32>
    %cst_38 = arith.constant 1.000000e+00 : f32
    %162 = vector.broadcast %cst_38 : f32 to vector<2x128xf32>
    %163 = arith.addf %162, %161 : vector<2x128xf32>
    %164 = arith.divf %162, %163 : vector<2x128xf32>
    %165 = arith.mulf %156, %135 : vector<2x128xf32>
    %166 = arith.mulf %150, %158 : vector<2x128xf32>
    %167 = arith.addf %165, %166 : vector<2x128xf32>
    %168 = math.tanh %167 : vector<2x128xf32>
    %169 = arith.mulf %164, %168 : vector<2x128xf32>
    %170 = vector.shape_cast %169 : vector<2x128xf32> to vector<2x1x128xf32>
    %c0_39 = arith.constant 0 : index
    %c4 = arith.constant 4 : index
    %c0_40 = arith.constant 0 : index
    %171 = vector.load %arg11[%c0_39, %c4, %c0_40] : memref<2x8x128xf32, #tpu.memory_space<vmem>>, vector<2x1x128xf32>
    tpu.vector_store %arg11[%c0_39, %c4, %c0_40], %170 {strides = array<i32>} : memref<2x8x128xf32, #tpu.memory_space<vmem>>, vector<2x1x128xf32>,
    %172 = vector.extract_strided_slice %8 {offsets = [0, 5, 0], sizes = [2, 1, 512], strides = [1, 1, 1]} : vector<2x8x512xf32> to vector<2x1x512xf32>
    %173 = vector.shape_cast %172 : vector<2x1x512xf32> to vector<2x512xf32>
    %174 = arith.truncf %169 : vector<2x128xf32> to vector<2x128xbf16>
    %cst_41 = arith.constant dense<0.000000e+00> : vector<2x512xf32>
    %175 = tpu.matmul %174, %9, %cst_41 {dimension_numbers = #tpu.dot_dimension_numbers<[1], [0], [0], [1], [0, 0, 1, 1], [], []>} : vector<2x128xbf16>, vector<128x512xbf16>, vector<2x512xf32> -> vector<2x512xf32>
    %176 = arith.addf %173, %175 : vector<2x512xf32>
    %177 = vector.extract_strided_slice %176 {offsets = [0, 0], sizes = [2, 128], strides = [1, 1]} : vector<2x512xf32> to vector<2x128xf32>
    %178 = arith.negf %177 : vector<2x128xf32>
    %179 = math.exp %178 : vector<2x128xf32>
    %cst_42 = arith.constant 1.000000e+00 : f32
    %180 = vector.broadcast %cst_42 : f32 to vector<2x128xf32>
    %181 = arith.addf %180, %179 : vector<2x128xf32>
    %182 = arith.divf %180, %181 : vector<2x128xf32>
    %183 = vector.extract_strided_slice %176 {offsets = [0, 128], sizes = [2, 128], strides = [1, 1]} : vector<2x512xf32> to vector<2x128xf32>
    %184 = arith.negf %183 : vector<2x128xf32>
    %185 = math.exp %184 : vector<2x128xf32>
    %cst_43 = arith.constant 1.000000e+00 : f32
    %186 = vector.broadcast %cst_43 : f32 to vector<2x128xf32>
    %187 = arith.addf %186, %185 : vector<2x128xf32>
    %188 = arith.divf %186, %187 : vector<2x128xf32>
    %189 = vector.extract_strided_slice %176 {offsets = [0, 256], sizes = [2, 128], strides = [1, 1]} : vector<2x512xf32> to vector<2x128xf32>
    %190 = math.tanh %189 : vector<2x128xf32>
    %191 = vector.extract_strided_slice %176 {offsets = [0, 384], sizes = [2, 128], strides = [1, 1]} : vector<2x512xf32> to vector<2x128xf32>
    %192 = arith.negf %191 : vector<2x128xf32>
    %193 = math.exp %192 : vector<2x128xf32>
    %cst_44 = arith.constant 1.000000e+00 : f32
    %194 = vector.broadcast %cst_44 : f32 to vector<2x128xf32>
    %195 = arith.addf %194, %193 : vector<2x128xf32>
    %196 = arith.divf %194, %195 : vector<2x128xf32>
    %197 = arith.mulf %188, %167 : vector<2x128xf32>
    %198 = arith.mulf %182, %190 : vector<2x128xf32>
    %199 = arith.addf %197, %198 : vector<2x128xf32>
    %200 = math.tanh %199 : vector<2x128xf32>
    %201 = arith.mulf %196, %200 : vector<2x128xf32>
    %202 = vector.shape_cast %201 : vector<2x128xf32> to vector<2x1x128xf32>
    %c0_45 = arith.constant 0 : index
    %c5 = arith.constant 5 : index
    %c0_46 = arith.constant 0 : index
    %203 = vector.load %arg11[%c0_45, %c5, %c0_46] : memref<2x8x128xf32, #tpu.memory_space<vmem>>, vector<2x1x128xf32>
    tpu.vector_store %arg11[%c0_45, %c5, %c0_46], %202 {strides = array<i32>} : memref<2x8x128xf32, #tpu.memory_space<vmem>>, vector<2x1x128xf32>,
    %204 = vector.extract_strided_slice %8 {offsets = [0, 6, 0], sizes = [2, 1, 512], strides = [1, 1, 1]} : vector<2x8x512xf32> to vector<2x1x512xf32>
    %205 = vector.shape_cast %204 : vector<2x1x512xf32> to vector<2x512xf32>
    %206 = arith.truncf %201 : vector<2x128xf32> to vector<2x128xbf16>
    %cst_47 = arith.constant dense<0.000000e+00> : vector<2x512xf32>
    %207 = tpu.matmul %206, %9, %cst_47 {dimension_numbers = #tpu.dot_dimension_numbers<[1], [0], [0], [1], [0, 0, 1, 1], [], []>} : vector<2x128xbf16>, vector<128x512xbf16>, vector<2x512xf32> -> vector<2x512xf32>
    %208 = arith.addf %205, %207 : vector<2x512xf32>
    %209 = vector.extract_strided_slice %208 {offsets = [0, 0], sizes = [2, 128], strides = [1, 1]} : vector<2x512xf32> to vector<2x128xf32>
    %210 = arith.negf %209 : vector<2x128xf32>
    %211 = math.exp %210 : vector<2x128xf32>
    %cst_48 = arith.constant 1.000000e+00 : f32
    %212 = vector.broadcast %cst_48 : f32 to vector<2x128xf32>
    %213 = arith.addf %212, %211 : vector<2x128xf32>
    %214 = arith.divf %212, %213 : vector<2x128xf32>
    %215 = vector.extract_strided_slice %208 {offsets = [0, 128], sizes = [2, 128], strides = [1, 1]} : vector<2x512xf32> to vector<2x128xf32>
    %216 = arith.negf %215 : vector<2x128xf32>
    %217 = math.exp %216 : vector<2x128xf32>
    %cst_49 = arith.constant 1.000000e+00 : f32
    %218 = vector.broadcast %cst_49 : f32 to vector<2x128xf32>
    %219 = arith.addf %218, %217 : vector<2x128xf32>
    %220 = arith.divf %218, %219 : vector<2x128xf32>
    %221 = vector.extract_strided_slice %208 {offsets = [0, 256], sizes = [2, 128], strides = [1, 1]} : vector<2x512xf32> to vector<2x128xf32>
    %222 = math.tanh %221 : vector<2x128xf32>
    %223 = vector.extract_strided_slice %208 {offsets = [0, 384], sizes = [2, 128], strides = [1, 1]} : vector<2x512xf32> to vector<2x128xf32>
    %224 = arith.negf %223 : vector<2x128xf32>
    %225 = math.exp %224 : vector<2x128xf32>
    %cst_50 = arith.constant 1.000000e+00 : f32
    %226 = vector.broadcast %cst_50 : f32 to vector<2x128xf32>
    %227 = arith.addf %226, %225 : vector<2x128xf32>
    %228 = arith.divf %226, %227 : vector<2x128xf32>
    %229 = arith.mulf %220, %199 : vector<2x128xf32>
    %230 = arith.mulf %214, %222 : vector<2x128xf32>
    %231 = arith.addf %229, %230 : vector<2x128xf32>
    %232 = math.tanh %231 : vector<2x128xf32>
    %233 = arith.mulf %228, %232 : vector<2x128xf32>
    %234 = vector.shape_cast %233 : vector<2x128xf32> to vector<2x1x128xf32>
    %c0_51 = arith.constant 0 : index
    %c6 = arith.constant 6 : index
    %c0_52 = arith.constant 0 : index
    %235 = vector.load %arg11[%c0_51, %c6, %c0_52] : memref<2x8x128xf32, #tpu.memory_space<vmem>>, vector<2x1x128xf32>
    tpu.vector_store %arg11[%c0_51, %c6, %c0_52], %234 {strides = array<i32>} : memref<2x8x128xf32, #tpu.memory_space<vmem>>, vector<2x1x128xf32>,
    %236 = vector.extract_strided_slice %8 {offsets = [0, 7, 0], sizes = [2, 1, 512], strides = [1, 1, 1]} : vector<2x8x512xf32> to vector<2x1x512xf32>
    %237 = vector.shape_cast %236 : vector<2x1x512xf32> to vector<2x512xf32>
    %238 = arith.truncf %233 : vector<2x128xf32> to vector<2x128xbf16>
    %cst_53 = arith.constant dense<0.000000e+00> : vector<2x512xf32>
    %239 = tpu.matmul %238, %9, %cst_53 {dimension_numbers = #tpu.dot_dimension_numbers<[1], [0], [0], [1], [0, 0, 1, 1], [], []>} : vector<2x128xbf16>, vector<128x512xbf16>, vector<2x512xf32> -> vector<2x512xf32>
    %240 = arith.addf %237, %239 : vector<2x512xf32>
    %241 = vector.extract_strided_slice %240 {offsets = [0, 0], sizes = [2, 128], strides = [1, 1]} : vector<2x512xf32> to vector<2x128xf32>
    %242 = arith.negf %241 : vector<2x128xf32>
    %243 = math.exp %242 : vector<2x128xf32>
    %cst_54 = arith.constant 1.000000e+00 : f32
    %244 = vector.broadcast %cst_54 : f32 to vector<2x128xf32>
    %245 = arith.addf %244, %243 : vector<2x128xf32>
    %246 = arith.divf %244, %245 : vector<2x128xf32>
    %247 = vector.extract_strided_slice %240 {offsets = [0, 128], sizes = [2, 128], strides = [1, 1]} : vector<2x512xf32> to vector<2x128xf32>
    %248 = arith.negf %247 : vector<2x128xf32>
    %249 = math.exp %248 : vector<2x128xf32>
    %cst_55 = arith.constant 1.000000e+00 : f32
    %250 = vector.broadcast %cst_55 : f32 to vector<2x128xf32>
    %251 = arith.addf %250, %249 : vector<2x128xf32>
    %252 = arith.divf %250, %251 : vector<2x128xf32>
    %253 = vector.extract_strided_slice %240 {offsets = [0, 256], sizes = [2, 128], strides = [1, 1]} : vector<2x512xf32> to vector<2x128xf32>
    %254 = math.tanh %253 : vector<2x128xf32>
    %255 = vector.extract_strided_slice %240 {offsets = [0, 384], sizes = [2, 128], strides = [1, 1]} : vector<2x512xf32> to vector<2x128xf32>
    %256 = arith.negf %255 : vector<2x128xf32>
    %257 = math.exp %256 : vector<2x128xf32>
    %cst_56 = arith.constant 1.000000e+00 : f32
    %258 = vector.broadcast %cst_56 : f32 to vector<2x128xf32>
    %259 = arith.addf %258, %257 : vector<2x128xf32>
    %260 = arith.divf %258, %259 : vector<2x128xf32>
    %261 = arith.mulf %252, %231 : vector<2x128xf32>
    %262 = arith.mulf %246, %254 : vector<2x128xf32>
    %263 = arith.addf %261, %262 : vector<2x128xf32>
    %264 = math.tanh %263 : vector<2x128xf32>
    %265 = arith.mulf %260, %264 : vector<2x128xf32>
    %266 = vector.shape_cast %265 : vector<2x128xf32> to vector<2x1x128xf32>
    %c0_57 = arith.constant 0 : index
    %c7 = arith.constant 7 : index
    %c0_58 = arith.constant 0 : index
    %267 = vector.load %arg11[%c0_57, %c7, %c0_58] : memref<2x8x128xf32, #tpu.memory_space<vmem>>, vector<2x1x128xf32>
    tpu.vector_store %arg11[%c0_57, %c7, %c0_58], %266 {strides = array<i32>} : memref<2x8x128xf32, #tpu.memory_space<vmem>>, vector<2x1x128xf32>,
    %c0_59 = arith.constant 0 : index
    %c0_60 = arith.constant 0 : index
    %c0_61 = arith.constant 0 : index
    %268 = vector.load %arg8[%c0_59, %c0_60, %c0_61] : memref<1x2x128xf32, #tpu.memory_space<vmem>>, vector<1x2x128xf32>
    %269 = vector.shape_cast %268 : vector<1x2x128xf32> to vector<2x128xf32>
    %270 = vector.shape_cast %265 : vector<2x128xf32> to vector<1x2x128xf32>
    tpu.vector_store %arg8[%c0_59, %c0_60, %c0_61], %270 {strides = array<i32>} : memref<1x2x128xf32, #tpu.memory_space<vmem>>, vector<1x2x128xf32>,
    %c0_62 = arith.constant 0 : index
    %c0_63 = arith.constant 0 : index
    %c0_64 = arith.constant 0 : index
    %271 = vector.load %arg9[%c0_62, %c0_63, %c0_64] : memref<1x2x128xf32, #tpu.memory_space<vmem>>, vector<1x2x128xf32>
    %272 = vector.shape_cast %271 : vector<1x2x128xf32> to vector<2x128xf32>
    %273 = vector.shape_cast %263 : vector<2x128xf32> to vector<1x2x128xf32>
    tpu.vector_store %arg9[%c0_62, %c0_63, %c0_64], %273 {strides = array<i32>} : memref<1x2x128xf32, #tpu.memory_space<vmem>>, vector<1x2x128xf32>,
    %c0_65 = arith.constant 0 : index
    %c0_66 = arith.constant 0 : index
    %c0_67 = arith.constant 0 : index
    %274 = vector.load %arg11[%c0_65, %c0_66, %c0_67] : memref<2x8x128xf32, #tpu.memory_space<vmem>>, vector<2x8x128xf32>
    %c0_68 = arith.constant 0 : index
    %c0_69 = arith.constant 0 : index
    %c0_70 = arith.constant 0 : index
    %275 = vector.load %arg7[%c0_68, %c0_69, %c0_70] : memref<2x8x128xf32, #tpu.memory_space<vmem>>, vector<2x8x128xf32>
    tpu.vector_store %arg7[%c0_68, %c0_69, %c0_70], %274 {strides = array<i32>} : memref<2x8x128xf32, #tpu.memory_space<vmem>>, vector<2x8x128xf32>,
    %276 = vector.shape_cast %274 : vector<2x8x128xf32> to vector<16x128xf32>
    %277 = arith.truncf %276 : vector<16x128xf32> to vector<16x128xbf16>
    %c0_71 = arith.constant 0 : index
    %c0_72 = arith.constant 0 : index
    %278 = vector.load %arg5[%c0_71, %c0_72] : memref<128x128xbf16, #tpu.memory_space<vmem>>, vector<128x128xbf16>
    %cst_73 = arith.constant dense<0.000000e+00> : vector<16x128xf32>
    %279 = tpu.matmul %277, %278, %cst_73 {dimension_numbers = #tpu.dot_dimension_numbers<[1], [0], [0], [1], [0, 0, 1, 1], [], []>} : vector<16x128xbf16>, vector<128x128xbf16>, vector<16x128xf32> -> vector<16x128xf32>
    %c0_74 = arith.constant 0 : index
    %c0_75 = arith.constant 0 : index
    %280 = vector.load %arg6[%c0_74, %c0_75] : memref<1x128xf32, #tpu.memory_space<vmem>>, vector<1x128xf32>
    %281 = vector.broadcast %280 : vector<1x128xf32> to vector<16x128xf32>
    %282 = arith.addf %279, %281 : vector<16x128xf32>
    %283 = vector.shape_cast %282 : vector<16x128xf32> to vector<2x8x128xf32>
    %c0_76 = arith.constant 0 : index
    %c0_77 = arith.constant 0 : index
    %c0_78 = arith.constant 0 : index
    %284 = vector.load %arg10[%c0_76, %c0_77, %c0_78] : memref<2x8x128xf32, #tpu.memory_space<vmem>>, vector<2x8x128xf32>
    tpu.vector_store %arg10[%c0_76, %c0_77, %c0_78], %283 {strides = array<i32>} : memref<2x8x128xf32, #tpu.memory_space<vmem>>, vector<2x8x128xf32>,
    return
  }
  func.func @transform_0(%arg0: i32) -> (i32, i32, i32) {
    %c0_i32 = arith.constant 0 : i32
    %c0_i32_0 = arith.constant 0 : i32
    %c0_i32_1 = arith.constant 0 : i32
    return %arg0, %c0_i32, %c0_i32_0 : i32, i32, i32
  }
  func.func @transform_1(%arg0: i32) -> (i32, i32) {
    %c0_i32 = arith.constant 0 : i32
    %c0_i32_0 = arith.constant 0 : i32
    %c0_i32_1 = arith.constant 0 : i32
    return %c0_i32, %c0_i32_0 : i32, i32
  }
  func.func @transform_2(%arg0: i32) -> (i32, i32) {
    %c0_i32 = arith.constant 0 : i32
    %c0_i32_0 = arith.constant 0 : i32
    %c0_i32_1 = arith.constant 0 : i32
    return %c0_i32, %c0_i32_0 : i32, i32
  }
  func.func @transform_3(%arg0: i32) -> (i32, i32) {
    %c0_i32 = arith.constant 0 : i32
    %c0_i32_0 = arith.constant 0 : i32
    %c0_i32_1 = arith.constant 0 : i32
    return %c0_i32, %c0_i32_0 : i32, i32
  }
  func.func @transform_4(%arg0: i32) -> (i32, i32) {
    %c0_i32 = arith.constant 0 : i32
    %c0_i32_0 = arith.constant 0 : i32
    %c0_i32_1 = arith.constant 0 : i32
    return %c0_i32, %c0_i32_0 : i32, i32
  }
  func.func @transform_5(%arg0: i32) -> (i32, i32) {
    %c0_i32 = arith.constant 0 : i32
    %c0_i32_0 = arith.constant 0 : i32
    %c0_i32_1 = arith.constant 0 : i32
    return %c0_i32, %c0_i32_0 : i32, i32
  }
  func.func @transform_6(%arg0: i32) -> (i32, i32, i32) {
    %c0_i32 = arith.constant 0 : i32
    %c0_i32_0 = arith.constant 0 : i32
    %c0_i32_1 = arith.constant 0 : i32
    return %arg0, %c0_i32, %c0_i32_0 : i32, i32, i32
  }
  func.func @transform_7(%arg0: i32) -> (i32, i32, i32) {
    %c0_i32 = arith.constant 0 : i32
    %c0_i32_0 = arith.constant 0 : i32
    %c0_i32_1 = arith.constant 0 : i32
    return %c0_i32, %arg0, %c0_i32_0 : i32, i32, i32
  }
  func.func @transform_8(%arg0: i32) -> (i32, i32, i32) {
    %c0_i32 = arith.constant 0 : i32
    %c0_i32_0 = arith.constant 0 : i32
    %c0_i32_1 = arith.constant 0 : i32
    return %c0_i32, %arg0, %c0_i32_0 : i32, i32, i32
  }
  func.func @transform_9(%arg0: i32) -> (i32, i32, i32) {
    %c0_i32 = arith.constant 0 : i32
    %c0_i32_0 = arith.constant 0 : i32
    %c0_i32_1 = arith.constant 0 : i32
    return %arg0, %c0_i32, %c0_i32_0 : i32, i32, i32
  }
}

</mosaic_0001>

<llo_original>
// kernel: tpu_custom_call.1
$region0: #{tpu_custom_call.1}
  #allocation0 [shape = 'u32[]', space=smem, size = 0x4, offset = 0x4, fixed_abs, tag = 'smem constant byte address 0x4 - core index']
  #allocation1 [shape = 'u32[144,128]{1,0:T(1,128)}', space=vmem, size = 0x12000, scoped, tag = 'internal scratch']
  #allocation2 [shape = 'f32[2,8,128]{2,1,0:T(8,128)}', space=vmem, size = 0x2000, scoped, tag = 'scratch operand']
  %s0 = inlined_call_operand.vmem [shape: f32[2,8,4], index: 0, kind: input, shape index: {}]
  %s1 = inlined_call_operand.vmem [shape: bf16[4,512], index: 1, kind: input, shape index: {}]
  %s2 = inlined_call_operand.hbm [shape: bf16[128,512], index: 2, kind: input, shape index: {}]
  %s3 = inlined_call_operand.vmem [shape: f32[1,512], index: 3, kind: input, shape index: {}]
  %s4 = inlined_call_operand.hbm [shape: bf16[128,128], index: 4, kind: input, shape index: {}]
  %s5 = inlined_call_operand.vmem [shape: f32[1,128], index: 5, kind: input, shape index: {}]
  %s6 = inlined_call_operand.hbm [shape: f32[2,8,128], index: 6, kind: output, shape index: {0}]
  %s7 = inlined_call_operand.hbm [shape: f32[1,2,128], index: 7, kind: output, shape index: {1}]
  %s8 = inlined_call_operand.hbm [shape: f32[1,2,128], index: 8, kind: output, shape index: {2}]
  %s9 = inlined_call_operand.hbm [shape: f32[2,8,128], index: 9, kind: output, shape index: {3}]
  %10 = xla_tuple %s6, %s7, %s8, %s9
  %s11 = sld [smem:[#allocation0]]
  $region66: #{tpu_custom_call.1} parent=0
    _
  %s13 = ssub.s32 1, %s11
  %s14 = scalar_select 0, %s13, %s11
  $region1: #{tpu_custom_call.1} parent=0
    #allocation3 [shape = 'u8[131072]{0}', space=vmem, size = 0x20000, scoped, tag = 'input window, operand 2, single buffered']
    #allocation4 [shape = 's32[1]{0}', space=sflag, size = 0x4, scoped, tag = 'scoped memory for tpu_custom_call.1']
    #allocation5 [shape = 's32[1]{0}', space=sflag, size = 0x4, scoped, tag = 'scoped memory for tpu_custom_call.1']
    #allocation6 [shape = 'u8[32768]{0}', space=vmem, size = 0x8000, scoped, tag = 'input window, operand 4, single buffered']
    #allocation7 [shape = 's32[1]{0}', space=sflag, size = 0x4, scoped, tag = 'scoped memory for tpu_custom_call.1']
    #allocation8 [shape = 'u8[8192]{0}', space=vmem, size = 0x2000, scoped, tag = 'output window, operand 0, single buffered']
    #allocation9 [shape = 'u8[1024]{0}', space=vmem, size = 0x400, scoped, tag = 'output window, operand 1, single buffered']
    #allocation10 [shape = 's32[1]{0}', space=sflag, size = 0x4, scoped, tag = 'scoped memory for tpu_custom_call.1']
    #allocation11 [shape = 'u8[1024]{0}', space=vmem, size = 0x400, scoped, tag = 'output window, operand 2, single buffered']
    #allocation12 [shape = 'u8[8192]{0}', space=vmem, size = 0x2000, scoped, tag = 'output window, operand 3, single buffered']
    #allocation13 [shape = 's32[1]{0}', space=sflag, size = 0x4, scoped, tag = 'scoped memory for tpu_custom_call.1']
    %15 = vsyncpa [#allocation4], 0
    %16 = vsyncpa [#allocation7], 0
    %17 = vsyncpa [#allocation5], 0
    %18 = vsyncpa [#allocation10], 0
    %19 = vsyncpa [#allocation13], 0
    // Predicated region
    $region2: #{tpu_custom_call.1} parent=1 // pred_check
      _
    $region3: #{tpu_custom_call.1} parent=1 // pred_check_branch
      %21 = sbr.rel (0) target = $region5
    $region4: #{tpu_custom_call.1} parent=1 // pred_region
      _
    $region5: #{tpu_custom_call.1} parent=1 // pred_fallthru
      _
    // Predicated region
    $region6: #{tpu_custom_call.1} parent=1 // pred_check
      _
    $region7: #{tpu_custom_call.1} parent=1 // pred_check_branch
      %23 = sbr.rel (0) target = $region9
    $region8: #{tpu_custom_call.1} parent=1 // pred_region
      _
    $region9: #{tpu_custom_call.1} parent=1 // pred_fallthru
      _
    // Predicated region
    $region10: #{tpu_custom_call.1} parent=1 // pred_check
      _
    $region11: #{tpu_custom_call.1} parent=1 // pred_check_branch
      %25 = sbr.rel (0) target = $region13
    $region12: #{tpu_custom_call.1} parent=1 // pred_region
      %s27 = ssub.s32 4096, 4096
      %28 = vsyncadd [#allocation4], %s27
      %s29 = sshll.u32 [#allocation3], 4
      %s30 = int_to_ptr.vmem [resolvable:$true] %s29
      %35 = dma.hbm_to_vmem [thread:$0]  %s2, 4096, %s30, [#allocation4], 256, 256, 16
    $region13: #{tpu_custom_call.1} parent=1 // pred_fallthru
      _
    // Predicated region
    $region14: #{tpu_custom_call.1} parent=1 // pred_check
      _
    $region15: #{tpu_custom_call.1} parent=1 // pred_check_branch
      %37 = sbr.rel (0) target = $region17
    $region16: #{tpu_custom_call.1} parent=1 // pred_region
      _
    $region17: #{tpu_custom_call.1} parent=1 // pred_fallthru
      _
    // Predicated region
    $region18: #{tpu_custom_call.1} parent=1 // pred_check
      _
    $region19: #{tpu_custom_call.1} parent=1 // pred_check_branch
      %39 = sbr.rel (0) target = $region21
    $region20: #{tpu_custom_call.1} parent=1 // pred_region
      %s41 = ssub.s32 1024, 1024
      %42 = vsyncadd [#allocation7], %s41
      %s43 = sshll.u32 [#allocation6], 4
      %s44 = int_to_ptr.vmem [resolvable:$true] %s43
      %49 = dma.hbm_to_vmem [thread:$0]  %s4, 1024, %s44, [#allocation7], 64, 64, 4
    $region21: #{tpu_custom_call.1} parent=1 // pred_fallthru
      _
    // Predicated region
    $region22: #{tpu_custom_call.1} parent=1 // pred_check
      _
    $region23: #{tpu_custom_call.1} parent=1 // pred_check_branch
      %51 = sbr.rel (0) target = $region25
    $region24: #{tpu_custom_call.1} parent=1 // pred_region
      _
    $region25: #{tpu_custom_call.1} parent=1 // pred_fallthru
      _
    // Predicated region
    $region26: #{tpu_custom_call.1} parent=1 // pred_check
      _
    $region27: #{tpu_custom_call.1} parent=1 // pred_check_branch
      %53 = sbr.rel (0) target = $region29
    $region28: #{tpu_custom_call.1} parent=1 // pred_region
      %54 = dma.done [#allocation4], 4096
    $region29: #{tpu_custom_call.1} parent=1 // pred_fallthru
      _
    // Predicated region
    $region30: #{tpu_custom_call.1} parent=1 // pred_check
      _
    $region31: #{tpu_custom_call.1} parent=1 // pred_check_branch
      %56 = sbr.rel (0) target = $region33
    $region32: #{tpu_custom_call.1} parent=1 // pred_region
      %57 = dma.done [#allocation7], 1024
    $region33: #{tpu_custom_call.1} parent=1 // pred_fallthru
      _
    %v59 = vld [vmem:[%s0] sm:$0xff]
    %v60 = vld [vmem:[%s0 + $0x8] sm:$0xff]
    %v61 = vpack.c.bf16 %v60, %v59
    %v62 = vld [vmem:[%s1] sm:$0xff]
    %v63 = vld [vmem:[%s3] sm:$0xf]
    %v65 = vlaneseq
    %v66 = vshrl.u32 %v65, 7
    %v67 = vsub.s32 0, %v66
    %v68 = vrot.slane %v63, %v67
    %v69 = vlaneseq
    %v70 = vshrl.u32 %v69, 7
    %v71 = vsub.s32 1, %v70
    %v72 = vrot.slane %v63, %v71
    %v73 = vlaneseq
    %v74 = vshrl.u32 %v73, 7
    %v75 = vsub.s32 2, %v74
    %v76 = vrot.slane %v63, %v75
    %v77 = vlaneseq
    %v78 = vshrl.u32 %v77, 7
    %v79 = vsub.s32 3, %v78
    %v80 = vrot.slane %v63, %v79
    %v86 = vcombine.high %v62, %v62
    %v88 = vunpack.c.l.s4 1983009808
    %v89 = vunpack.c.0.s8 %v88
    %v90 = vlaneseq
    %v91 = vshrl.u32 %v90, 7
    %v92 = vsub.s32 %v89, %v91
    %v93 = vrot.slane %v62, %v92
    %v95 = vunpack.c.l.s4 1983009808
    %v96 = vunpack.c.0.s8 %v95
    %v97 = vlaneseq
    %v98 = vshrl.u32 %v97, 7
    %v99 = vsub.s32 %v96, %v98
    %v100 = vrot.slane %v86, %v99
    %v101 = vcombine.high %v93, %v93
    %v102 = vcombine.high %v100, %v100
    %vm103 = vcmask 31744
    %v105 = vsel %vm103, %v61, 0
    %vm107 = vcmask 1041408
    %v109 = vsel %vm107, %v93, 0
    %v112 = vsel %vm107, %v101, 0
    %v115 = vsel %vm107, %v100, 0
    %v118 = vsel %vm107, %v102, 0
    %120 = vmatprep.subr.bf16.mxu0 0
    %121 = vmatpush1.bf16.msra.mxu0 0
    %122 = vmatprep.subr.bf16.mxu0 0
    %123 = vmatpush1.bf16.msra.mxu0 0
    %124 = vmatprep.subr.bf16.mxu0 0
    %125 = vmatpush1.bf16.msra.mxu0 0
    %126 = vmatprep.subr.bf16.mxu0 0
    %127 = vmatpush1.bf16.msra.mxu0 0
    %128 = vmatprep.subr.bf16.mxu0 0
    %129 = vmatpush1.bf16.msra.mxu0 0
    %130 = vmatprep.subr.bf16.mxu0 0
    %131 = vmatpush1.bf16.msra.mxu0 0
    %132 = vmatprep.subr.bf16.mxu0 0
    %133 = vmatpush1.bf16.msra.mxu0 0
    %134 = vmatprep.subr.bf16.mxu0 %v112
    %135 = vmatpush1.bf16.msra.mxu0 %v109
    %136 = vmatprep.subr.bf16.mxu0 0
    %137 = vmatpush2.bf16.msra.mxu0 0
    %138 = vmatprep.subr.bf16.mxu0 0
    %139 = vmatpush2.bf16.msra.mxu0 0
    %140 = vmatprep.subr.bf16.mxu0 0
    %141 = vmatpush2.bf16.msra.mxu0 0
    %142 = vmatprep.subr.bf16.mxu0 0
    %143 = vmatpush2.bf16.msra.mxu0 0
    %144 = vmatprep.subr.bf16.mxu0 0
    %145 = vmatpush2.bf16.msra.mxu0 0
    %146 = vmatprep.subr.bf16.mxu0 0
    %147 = vmatpush2.bf16.msra.mxu0 0
    %148 = vmatprep.subr.bf16.mxu0 0
    %149 = vmatpush2.bf16.msra.mxu0 0
    %150 = vmatprep.subr.bf16.mxu0 0
    %151 = vmatpush2.bf16.msra.mxu0 0
    %152 = vmatprep.mubr.bf16.mxu0 0
    %153 = vmatmul.mubr.bf16.gmra.mxu0 %v105
    %v154 = vpop.f32.mrf.mxu0
    %v155 = vadd.f32 %v68, %v154
    %v156 = vpop.f32.mrf.mxu0
    %v157 = vadd.f32 %v72, %v156
    %v158 = vpop.f32.mrf.mxu0
    %v159 = vadd.f32 %v68, %v158
    %v160 = vpop.f32.mrf.mxu0
    %v161 = vadd.f32 %v72, %v160
    %162 = vdwg.mxu0
    %163 = vmatprep.subr.bf16.mxu0 0
    %164 = vmatpush1.bf16.msra.mxu0 0
    %165 = vmatprep.subr.bf16.mxu0 0
    %166 = vmatpush1.bf16.msra.mxu0 0
    %167 = vmatprep.subr.bf16.mxu0 0
    %168 = vmatpush1.bf16.msra.mxu0 0
    %169 = vmatprep.subr.bf16.mxu0 0
    %170 = vmatpush1.bf16.msra.mxu0 0
    %171 = vmatprep.subr.bf16.mxu0 0
    %172 = vmatpush1.bf16.msra.mxu0 0
    %173 = vmatprep.subr.bf16.mxu0 0
    %174 = vmatpush1.bf16.msra.mxu0 0
    %175 = vmatprep.subr.bf16.mxu0 0
    %176 = vmatpush1.bf16.msra.mxu0 0
    %177 = vmatprep.subr.bf16.mxu0 %v118
    %178 = vmatpush1.bf16.msra.mxu0 %v115
    %179 = vmatprep.subr.bf16.mxu0 0
    %180 = vmatpush2.bf16.msra.mxu0 0
    %181 = vmatprep.subr.bf16.mxu0 0
    %182 = vmatpush2.bf16.msra.mxu0 0
    %183 = vmatprep.subr.bf16.mxu0 0
    %184 = vmatpush2.bf16.msra.mxu0 0
    %185 = vmatprep.subr.bf16.mxu0 0
    %186 = vmatpush2.bf16.msra.mxu0 0
    %187 = vmatprep.subr.bf16.mxu0 0
    %188 = vmatpush2.bf16.msra.mxu0 0
    %189 = vmatprep.subr.bf16.mxu0 0
    %190 = vmatpush2.bf16.msra.mxu0 0
    %191 = vmatprep.subr.bf16.mxu0 0
    %192 = vmatpush2.bf16.msra.mxu0 0
    %193 = vmatprep.subr.bf16.mxu0 0
    %194 = vmatpush2.bf16.msra.mxu0 0
    %195 = vmatprep.mubr.bf16.mxu0 0
    %196 = vmatmul.mubr.bf16.gmra.mxu0 %v105
    %v197 = vpop.f32.mrf.mxu0
    %v198 = vadd.f32 %v76, %v197
    %v199 = vpop.f32.mrf.mxu0
    %v200 = vadd.f32 %v80, %v199
    %v201 = vpop.f32.mrf.mxu0
    %v202 = vadd.f32 %v76, %v201
    %v203 = vpop.f32.mrf.mxu0
    %v204 = vadd.f32 %v80, %v203
    %205 = vdwg.mxu0
    %v206 = vld [vmem:[#allocation3] sm:$0xff]
    %v207 = vld [vmem:[#allocation3 + $0x8] sm:$0xff]
    %v208 = vld [vmem:[#allocation3 + $0x10] sm:$0xff]
    %v209 = vld [vmem:[#allocation3 + $0x18] sm:$0xff]
    %v210 = vld [vmem:[#allocation3 + $0x20] sm:$0xff]
    %v211 = vld [vmem:[#allocation3 + $0x28] sm:$0xff]
    %v212 = vld [vmem:[#allocation3 + $0x30] sm:$0xff]
    %v213 = vld [vmem:[#allocation3 + $0x38] sm:$0xff]
    %v214 = vld [vmem:[#allocation3 + $0x40] sm:$0xff]
    %v215 = vld [vmem:[#allocation3 + $0x48] sm:$0xff]
    %v216 = vld [vmem:[#allocation3 + $0x50] sm:$0xff]
    %v217 = vld [vmem:[#allocation3 + $0x58] sm:$0xff]
    %v218 = vld [vmem:[#allocation3 + $0x60] sm:$0xff]
    %v219 = vld [vmem:[#allocation3 + $0x68] sm:$0xff]
    %v220 = vld [vmem:[#allocation3 + $0x70] sm:$0xff]
    %v221 = vld [vmem:[#allocation3 + $0x78] sm:$0xff]
    %v222 = vld [vmem:[#allocation3 + $0x80] sm:$0xff]
    %v223 = vld [vmem:[#allocation3 + $0x88] sm:$0xff]
    %v224 = vld [vmem:[#allocation3 + $0x90] sm:$0xff]
    %v225 = vld [vmem:[#allocation3 + $0x98] sm:$0xff]
    %v226 = vld [vmem:[#allocation3 + $0xa0] sm:$0xff]
    %v227 = vld [vmem:[#allocation3 + $0xa8] sm:$0xff]
    %v228 = vld [vmem:[#allocation3 + $0xb0] sm:$0xff]
    %v229 = vld [vmem:[#allocation3 + $0xb8] sm:$0xff]
    %v230 = vld [vmem:[#allocation3 + $0xc0] sm:$0xff]
    %v231 = vld [vmem:[#allocation3 + $0xc8] sm:$0xff]
    %v232 = vld [vmem:[#allocation3 + $0xd0] sm:$0xff]
    %v233 = vld [vmem:[#allocation3 + $0xd8] sm:$0xff]
    %v234 = vld [vmem:[#allocation3 + $0xe0] sm:$0xff]
    %v235 = vld [vmem:[#allocation3 + $0xe8] sm:$0xff]
    %v236 = vld [vmem:[#allocation3 + $0xf0] sm:$0xff]
    %v237 = vld [vmem:[#allocation3 + $0xf8] sm:$0xff]
    %v270 = vunpack.c.l.b16 %v206
    %v271 = vunpack.c.h.b16 %v206
    %v272 = vunpack.c.l.b16 %v207
    %v273 = vunpack.c.h.b16 %v207
    %v274 = vunpack.c.l.b16 %v208
    %v275 = vunpack.c.h.b16 %v208
    %v276 = vunpack.c.l.b16 %v209
    %v277 = vunpack.c.h.b16 %v209
    %v278 = vunpack.c.l.b16 %v210
    %v279 = vunpack.c.h.b16 %v210
    %v280 = vunpack.c.l.b16 %v211
    %v281 = vunpack.c.h.b16 %v211
    %v282 = vunpack.c.l.b16 %v212
    %v283 = vunpack.c.h.b16 %v212
    %v284 = vunpack.c.l.b16 %v213
    %v285 = vunpack.c.h.b16 %v213
    %v286 = vunpack.c.l.b16 %v214
    %v287 = vunpack.c.h.b16 %v214
    %v288 = vunpack.c.l.b16 %v215
    %v289 = vunpack.c.h.b16 %v215
    %v290 = vunpack.c.l.b16 %v216
    %v291 = vunpack.c.h.b16 %v216
    %v292 = vunpack.c.l.b16 %v217
    %v293 = vunpack.c.h.b16 %v217
    %v294 = vunpack.c.l.b16 %v218
    %v295 = vunpack.c.h.b16 %v218
    %v296 = vunpack.c.l.b16 %v219
    %v297 = vunpack.c.h.b16 %v219
    %v298 = vunpack.c.l.b16 %v220
    %v299 = vunpack.c.h.b16 %v220
    %v300 = vunpack.c.l.b16 %v221
    %v301 = vunpack.c.h.b16 %v221
    %v302 = vunpack.c.l.b16 %v222
    %v303 = vunpack.c.h.b16 %v222
    %v304 = vunpack.c.l.b16 %v223
    %v305 = vunpack.c.h.b16 %v223
    %v306 = vunpack.c.l.b16 %v224
    %v307 = vunpack.c.h.b16 %v224
    %v308 = vunpack.c.l.b16 %v225
    %v309 = vunpack.c.h.b16 %v225
    %v310 = vunpack.c.l.b16 %v226
    %v311 = vunpack.c.h.b16 %v226
    %v312 = vunpack.c.l.b16 %v227
    %v313 = vunpack.c.h.b16 %v227
    %v314 = vunpack.c.l.b16 %v228
    %v315 = vunpack.c.h.b16 %v228
    %v316 = vunpack.c.l.b16 %v229
    %v317 = vunpack.c.h.b16 %v229
    %v318 = vunpack.c.l.b16 %v230
    %v319 = vunpack.c.h.b16 %v230
    %v320 = vunpack.c.l.b16 %v231
    %v321 = vunpack.c.h.b16 %v231
    %v322 = vunpack.c.l.b16 %v232
    %v323 = vunpack.c.h.b16 %v232
    %v324 = vunpack.c.l.b16 %v233
    %v325 = vunpack.c.h.b16 %v233
    %v326 = vunpack.c.l.b16 %v234
    %v327 = vunpack.c.h.b16 %v234
    %v328 = vunpack.c.l.b16 %v235
    %v329 = vunpack.c.h.b16 %v235
    %v330 = vunpack.c.l.b16 %v236
    %v331 = vunpack.c.h.b16 %v236
    %v332 = vunpack.c.l.b16 %v237
    %v333 = vunpack.c.h.b16 %v237
    %v334 = vpack.c.b16 %v274, %v270
    %v335 = vpack.c.b16 %v275, %v271
    %v336 = vpack.c.b16 %v276, %v272
    %v337 = vpack.c.b16 %v277, %v273
    %v338 = vpack.c.b16 %v282, %v278
    %v339 = vpack.c.b16 %v283, %v279
    %v340 = vpack.c.b16 %v284, %v280
    %v341 = vpack.c.b16 %v285, %v281
    %v342 = vpack.c.b16 %v290, %v286
    %v343 = vpack.c.b16 %v291, %v287
    %v344 = vpack.c.b16 %v292, %v288
    %v345 = vpack.c.b16 %v293, %v289
    %v346 = vpack.c.b16 %v298, %v294
    %v347 = vpack.c.b16 %v299, %v295
    %v348 = vpack.c.b16 %v300, %v296
    %v349 = vpack.c.b16 %v301, %v297
    %v350 = vpack.c.b16 %v306, %v302
    %v351 = vpack.c.b16 %v307, %v303
    %v352 = vpack.c.b16 %v308, %v304
    %v353 = vpack.c.b16 %v309, %v305
    %v354 = vpack.c.b16 %v314, %v310
    %v355 = vpack.c.b16 %v315, %v311
    %v356 = vpack.c.b16 %v316, %v312
    %v357 = vpack.c.b16 %v317, %v313
    %v358 = vpack.c.b16 %v322, %v318
    %v359 = vpack.c.b16 %v323, %v319
    %v360 = vpack.c.b16 %v324, %v320
    %v361 = vpack.c.b16 %v325, %v321
    %v362 = vpack.c.b16 %v330, %v326
    %v363 = vpack.c.b16 %v331, %v327
    %v364 = vpack.c.b16 %v332, %v328
    %v365 = vpack.c.b16 %v333, %v329
    %398 = vmatprep.subr.bf16.mxu0 %v363
    %399 = vmatpush1.bf16.msra.mxu0 %v362
    %400 = vmatprep.subr.bf16.mxu0 %v359
    %401 = vmatpush1.bf16.msra.mxu0 %v358
    %402 = vmatprep.subr.bf16.mxu0 %v355
    %403 = vmatpush1.bf16.msra.mxu0 %v354
    %404 = vmatprep.subr.bf16.mxu0 %v351
    %405 = vmatpush1.bf16.msra.mxu0 %v350
    %406 = vmatprep.subr.bf16.mxu0 %v347
    %407 = vmatpush1.bf16.msra.mxu0 %v346
    %408 = vmatprep.subr.bf16.mxu0 %v343
    %409 = vmatpush1.bf16.msra.mxu0 %v342
    %410 = vmatprep.subr.bf16.mxu0 %v339
    %411 = vmatpush1.bf16.msra.mxu0 %v338
    %412 = vmatprep.subr.bf16.mxu0 %v335
    %413 = vmatpush1.bf16.msra.mxu0 %v334
    %414 = vmatprep.subr.bf16.mxu0 0
    %415 = vmatpush2.bf16.msra.mxu0 0
    %416 = vmatprep.subr.bf16.mxu0 0
    %417 = vmatpush2.bf16.msra.mxu0 0
    %418 = vmatprep.subr.bf16.mxu0 0
    %419 = vmatpush2.bf16.msra.mxu0 0
    %420 = vmatprep.subr.bf16.mxu0 0
    %421 = vmatpush2.bf16.msra.mxu0 0
    %422 = vmatprep.subr.bf16.mxu0 0
    %423 = vmatpush2.bf16.msra.mxu0 0
    %424 = vmatprep.subr.bf16.mxu0 0
    %425 = vmatpush2.bf16.msra.mxu0 0
    %426 = vmatprep.subr.bf16.mxu0 0
    %427 = vmatpush2.bf16.msra.mxu0 0
    %428 = vmatprep.subr.bf16.mxu0 0
    %429 = vmatpush2.bf16.msra.mxu0 0
    %430 = vmatprep.mubr.bf16.mxu0 0
    %431 = vmatmul.mubr.bf16.gmra.mxu0 0
    %v432 = vpop.f32.mrf.mxu0
    %v433 = vadd.f32 0.0, %v432
    %v434 = vpop.f32.mrf.mxu0
    %v435 = vadd.f32 0.0, %v434
    %v436 = vpop.f32.mrf.mxu0
    %v437 = vpop.f32.mrf.mxu0
    %438 = vdwg.mxu0
    %439 = vmatprep.subr.bf16.mxu0 %v365
    %440 = vmatpush1.bf16.msra.mxu0 %v364
    %441 = vmatprep.subr.bf16.mxu0 %v361
    %442 = vmatpush1.bf16.msra.mxu0 %v360
    %443 = vmatprep.subr.bf16.mxu0 %v357
    %444 = vmatpush1.bf16.msra.mxu0 %v356
    %445 = vmatprep.subr.bf16.mxu0 %v353
    %446 = vmatpush1.bf16.msra.mxu0 %v352
    %447 = vmatprep.subr.bf16.mxu0 %v349
    %448 = vmatpush1.bf16.msra.mxu0 %v348
    %449 = vmatprep.subr.bf16.mxu0 %v345
    %450 = vmatpush1.bf16.msra.mxu0 %v344
    %451 = vmatprep.subr.bf16.mxu0 %v341
    %452 = vmatpush1.bf16.msra.mxu0 %v340
    %453 = vmatprep.subr.bf16.mxu0 %v337
    %454 = vmatpush1.bf16.msra.mxu0 %v336
    %455 = vmatprep.subr.bf16.mxu0 0
    %456 = vmatpush2.bf16.msra.mxu0 0
    %457 = vmatprep.subr.bf16.mxu0 0
    %458 = vmatpush2.bf16.msra.mxu0 0
    %459 = vmatprep.subr.bf16.mxu0 0
    %460 = vmatpush2.bf16.msra.mxu0 0
    %461 = vmatprep.subr.bf16.mxu0 0
    %462 = vmatpush2.bf16.msra.mxu0 0
    %463 = vmatprep.subr.bf16.mxu0 0
    %464 = vmatpush2.bf16.msra.mxu0 0
    %465 = vmatprep.subr.bf16.mxu0 0
    %466 = vmatpush2.bf16.msra.mxu0 0
    %467 = vmatprep.subr.bf16.mxu0 0
    %468 = vmatpush2.bf16.msra.mxu0 0
    %469 = vmatprep.subr.bf16.mxu0 0
    %470 = vmatpush2.bf16.msra.mxu0 0
    %471 = vmatprep.mubr.bf16.mxu0 0
    %472 = vmatmul.mubr.bf16.gmra.mxu0 0
    %v473 = vpop.f32.mrf.mxu0
    %v474 = vadd.f32 0.0, %v473
    %v475 = vpop.f32.mrf.mxu0
    %v476 = vadd.f32 0.0, %v475
    %v477 = vpop.f32.mrf.mxu0
    %v478 = vpop.f32.mrf.mxu0
    %479 = vdwg.mxu0
    %v484 = vrot.slane %v433, 1
    %v485 = vrot.slane %v435, 1
    %v486 = vrot.slane %v474, 1
    %v487 = vrot.slane %v476, 1
    %v496 = vadd.f32 %v155, %v433
    %v497 = vadd.f32 %v157, %v435
    %v498 = vadd.f32 %v198, %v474
    %v499 = vadd.f32 %v200, %v476
    %v500 = vadd.f32 %v159, %v484
    %v501 = vadd.f32 %v161, %v485
    %v502 = vadd.f32 %v202, %v486
    %v503 = vadd.f32 %v204, %v487
    %v504 = vxor.u32 %v496, 2147483648
    %v505 = vxor.u32 %v500, 2147483648
    %v506 = vmul.f32 %v504, 1.442695
    %v507 = vpow.pop %v506
    %v508 = vmul.f32 %v505, 1.442695
    %v509 = vpow.pop %v508
    %v510 = vadd.f32 %v507, 1.0
    %v511 = vadd.f32 %v509, 1.0
    %v512 = vrcp.pop %v510
    %v513 = vmul.f32 1.0, %v512
    %v514 = vrcp.pop %v511
    %v515 = vmul.f32 1.0, %v514
    %v516 = vxor.u32 %v497, 2147483648
    %v517 = vxor.u32 %v501, 2147483648
    %v518 = vmul.f32 %v516, 1.442695
    %v519 = vpow.pop %v518
    %v520 = vmul.f32 %v517, 1.442695
    %v521 = vpow.pop %v520
    %v522 = vadd.f32 %v519, 1.0
    %v523 = vadd.f32 %v521, 1.0
    %v524 = vrcp.pop %v522
    %v525 = vmul.f32 1.0, %v524
    %v526 = vrcp.pop %v523
    %v527 = vmul.f32 1.0, %v526
    %v528 = vtanh.pop %v498
    %v529 = vtanh.pop %v502
    %v530 = vxor.u32 %v499, 2147483648
    %v531 = vxor.u32 %v503, 2147483648
    %v532 = vmul.f32 %v530, 1.442695
    %v533 = vpow.pop %v532
    %v534 = vmul.f32 %v531, 1.442695
    %v535 = vpow.pop %v534
    %v536 = vadd.f32 %v533, 1.0
    %v537 = vadd.f32 %v535, 1.0
    %v538 = vrcp.pop %v536
    %v539 = vmul.f32 1.0, %v538
    %v540 = vrcp.pop %v537
    %v541 = vmul.f32 1.0, %v540
    %v542 = vmul.f32 %v525, 0.0
    %v543 = vmul.f32 %v527, 0.0
    %v544 = vmul.f32 %v513, %v528
    %v545 = vmul.f32 %v515, %v529
    %v546 = vadd.f32 %v542, %v544
    %v547 = vadd.f32 %v543, %v545
    %v548 = vtanh.pop %v546
    %v549 = vtanh.pop %v547
    %v550 = vmul.f32 %v539, %v548
    %v551 = vmul.f32 %v541, %v549
    %552 = vst [vmem:[#allocation2] sm:$0x1] %v550
    %553 = vst [vmem:[#allocation2 + $0x8] sm:$0x1] %v551
    %v554 = vpack.c.bf16 %v550, %v550
    %v555 = vpack.c.bf16 %v551, %v551
    %v558 = vunpack.c.l.b16 %v554
    %v559 = vunpack.c.l.b16 %v555
    %v560 = vrot.slane %v559, 7
    %vm561 = vcmask 1041409
    %v562 = vsel %vm561, %v560, %v558
    %v563 = vpack.c.b16 %v562, %v562
    %565 = vmatprep.subr.bf16.mxu0 %v363
    %566 = vmatpush1.bf16.msra.mxu0 %v362
    %567 = vmatprep.subr.bf16.mxu0 %v359
    %568 = vmatpush1.bf16.msra.mxu0 %v358
    %569 = vmatprep.subr.bf16.mxu0 %v355
    %570 = vmatpush1.bf16.msra.mxu0 %v354
    %571 = vmatprep.subr.bf16.mxu0 %v351
    %572 = vmatpush1.bf16.msra.mxu0 %v350
    %573 = vmatprep.subr.bf16.mxu0 %v347
    %574 = vmatpush1.bf16.msra.mxu0 %v346
    %575 = vmatprep.subr.bf16.mxu0 %v343
    %576 = vmatpush1.bf16.msra.mxu0 %v342
    %577 = vmatprep.subr.bf16.mxu0 %v339
    %578 = vmatpush1.bf16.msra.mxu0 %v338
    %579 = vmatprep.subr.bf16.mxu0 %v335
    %580 = vmatpush1.bf16.msra.mxu0 %v334
    %581 = vmatprep.subr.bf16.mxu0 0
    %582 = vmatpush2.bf16.msra.mxu0 0
    %583 = vmatprep.subr.bf16.mxu0 0
    %584 = vmatpush2.bf16.msra.mxu0 0
    %585 = vmatprep.subr.bf16.mxu0 0
    %586 = vmatpush2.bf16.msra.mxu0 0
    %587 = vmatprep.subr.bf16.mxu0 0
    %588 = vmatpush2.bf16.msra.mxu0 0
    %589 = vmatprep.subr.bf16.mxu0 0
    %590 = vmatpush2.bf16.msra.mxu0 0
    %591 = vmatprep.subr.bf16.mxu0 0
    %592 = vmatpush2.bf16.msra.mxu0 0
    %593 = vmatprep.subr.bf16.mxu0 0
    %594 = vmatpush2.bf16.msra.mxu0 0
    %595 = vmatprep.subr.bf16.mxu0 0
    %596 = vmatpush2.bf16.msra.mxu0 0
    %597 = vmatprep.mubr.bf16.mxu0 0
    %598 = vmatmul.mubr.bf16.gmra.mxu0 %v563
    %v599 = vpop.f32.mrf.mxu0
    %v600 = vadd.f32 0.0, %v599
    %v601 = vpop.f32.mrf.mxu0
    %v602 = vadd.f32 0.0, %v601
    %v603 = vpop.f32.mrf.mxu0
    %v604 = vpop.f32.mrf.mxu0
    %605 = vdwg.mxu0
    %606 = vmatprep.subr.bf16.mxu0 %v365
    %607 = vmatpush1.bf16.msra.mxu0 %v364
    %608 = vmatprep.subr.bf16.mxu0 %v361
    %609 = vmatpush1.bf16.msra.mxu0 %v360
    %610 = vmatprep.subr.bf16.mxu0 %v357
    %611 = vmatpush1.bf16.msra.mxu0 %v356
    %612 = vmatprep.subr.bf16.mxu0 %v353
    %613 = vmatpush1.bf16.msra.mxu0 %v352
    %614 = vmatprep.subr.bf16.mxu0 %v349
    %615 = vmatpush1.bf16.msra.mxu0 %v348
    %616 = vmatprep.subr.bf16.mxu0 %v345
    %617 = vmatpush1.bf16.msra.mxu0 %v344
    %618 = vmatprep.subr.bf16.mxu0 %v341
    %619 = vmatpush1.bf16.msra.mxu0 %v340
    %620 = vmatprep.subr.bf16.mxu0 %v337
    %621 = vmatpush1.bf16.msra.mxu0 %v336
    %622 = vmatprep.subr.bf16.mxu0 0
    %623 = vmatpush2.bf16.msra.mxu0 0
    %624 = vmatprep.subr.bf16.mxu0 0
    %625 = vmatpush2.bf16.msra.mxu0 0
    %626 = vmatprep.subr.bf16.mxu0 0
    %627 = vmatpush2.bf16.msra.mxu0 0
    %628 = vmatprep.subr.bf16.mxu0 0
    %629 = vmatpush2.bf16.msra.mxu0 0
    %630 = vmatprep.subr.bf16.mxu0 0
    %631 = vmatpush2.bf16.msra.mxu0 0
    %632 = vmatprep.subr.bf16.mxu0 0
    %633 = vmatpush2.bf16.msra.mxu0 0
    %634 = vmatprep.subr.bf16.mxu0 0
    %635 = vmatpush2.bf16.msra.mxu0 0
    %636 = vmatprep.subr.bf16.mxu0 0
    %637 = vmatpush2.bf16.msra.mxu0 0
    %638 = vmatprep.mubr.bf16.mxu0 0
    %639 = vmatmul.mubr.bf16.gmra.mxu0 %v563
    %v640 = vpop.f32.mrf.mxu0
    %v641 = vadd.f32 0.0, %v640
    %v642 = vpop.f32.mrf.mxu0
    %v643 = vadd.f32 0.0, %v642
    %v644 = vpop.f32.mrf.mxu0
    %v645 = vpop.f32.mrf.mxu0
    %646 = vdwg.mxu0
    %v651 = vrot.slane %v600, 7
    %v652 = vrot.slane %v602, 7
    %v653 = vrot.slane %v641, 7
    %v654 = vrot.slane %v643, 7
    %v663 = vadd.f32 %v155, %v651
    %v664 = vadd.f32 %v157, %v652
    %v665 = vadd.f32 %v198, %v653
    %v666 = vadd.f32 %v200, %v654
    %v667 = vadd.f32 %v159, %v600
    %v668 = vadd.f32 %v161, %v602
    %v669 = vadd.f32 %v202, %v641
    %v670 = vadd.f32 %v204, %v643
    %v671 = vxor.u32 %v663, 2147483648
    %v672 = vxor.u32 %v667, 2147483648
    %v673 = vmul.f32 %v671, 1.442695
    %v674 = vpow.pop %v673
    %v675 = vmul.f32 %v672, 1.442695
    %v676 = vpow.pop %v675
    %v677 = vadd.f32 %v674, 1.0
    %v678 = vadd.f32 %v676, 1.0
    %v679 = vrcp.pop %v677
    %v680 = vmul.f32 1.0, %v679
    %v681 = vrcp.pop %v678
    %v682 = vmul.f32 1.0, %v681
    %v683 = vxor.u32 %v664, 2147483648
    %v684 = vxor.u32 %v668, 2147483648
    %v685 = vmul.f32 %v683, 1.442695
    %v686 = vpow.pop %v685
    %v687 = vmul.f32 %v684, 1.442695
    %v688 = vpow.pop %v687
    %v689 = vadd.f32 %v686, 1.0
    %v690 = vadd.f32 %v688, 1.0
    %v691 = vrcp.pop %v689
    %v692 = vmul.f32 1.0, %v691
    %v693 = vrcp.pop %v690
    %v694 = vmul.f32 1.0, %v693
    %v695 = vtanh.pop %v665
    %v696 = vtanh.pop %v669
    %v697 = vxor.u32 %v666, 2147483648
    %v698 = vxor.u32 %v670, 2147483648
    %v699 = vmul.f32 %v697, 1.442695
    %v700 = vpow.pop %v699
    %v701 = vmul.f32 %v698, 1.442695
    %v702 = vpow.pop %v701
    %v703 = vadd.f32 %v700, 1.0
    %v704 = vadd.f32 %v702, 1.0
    %v705 = vrcp.pop %v703
    %v706 = vmul.f32 1.0, %v705
    %v707 = vrcp.pop %v704
    %v708 = vmul.f32 1.0, %v707
    %v711 = vrot.slane %v546, 7
    %v712 = vrot.slane %v547, 7
    %v715 = vmul.f32 %v692, %v711
    %v716 = vmul.f32 %v694, %v712
    %v717 = vmul.f32 %v680, %v695
    %v718 = vmul.f32 %v682, %v696
    %v719 = vadd.f32 %v715, %v717
    %v720 = vadd.f32 %v716, %v718
    %v721 = vtanh.pop %v719
    %v722 = vtanh.pop %v720
    %v723 = vmul.f32 %v706, %v721
    %v724 = vmul.f32 %v708, %v722
    %725 = vst [vmem:[#allocation2] sm:$0x2] %v723
    %726 = vst [vmem:[#allocation2 + $0x8] sm:$0x2] %v724
    %v727 = vpack.c.bf16 %v723, %v723
    %v728 = vpack.c.bf16 %v724, %v724
    %v731 = vunpack.c.l.b16 %v727
    %v732 = vunpack.c.l.b16 %v728
    %v733 = vrot.slane %v731, 1
    %v734 = vsel %vm561, %v732, %v733
    %v735 = vpack.c.b16 %v734, %v734
    %737 = vmatprep.subr.bf16.mxu0 %v363
    %738 = vmatpush1.bf16.msra.mxu0 %v362
    %739 = vmatprep.subr.bf16.mxu0 %v359
    %740 = vmatpush1.bf16.msra.mxu0 %v358
    %741 = vmatprep.subr.bf16.mxu0 %v355
    %742 = vmatpush1.bf16.msra.mxu0 %v354
    %743 = vmatprep.subr.bf16.mxu0 %v351
    %744 = vmatpush1.bf16.msra.mxu0 %v350
    %745 = vmatprep.subr.bf16.mxu0 %v347
    %746 = vmatpush1.bf16.msra.mxu0 %v346
    %747 = vmatprep.subr.bf16.mxu0 %v343
    %748 = vmatpush1.bf16.msra.mxu0 %v342
    %749 = vmatprep.subr.bf16.mxu0 %v339
    %750 = vmatpush1.bf16.msra.mxu0 %v338
    %751 = vmatprep.subr.bf16.mxu0 %v335
    %752 = vmatpush1.bf16.msra.mxu0 %v334
    %753 = vmatprep.subr.bf16.mxu0 0
    %754 = vmatpush2.bf16.msra.mxu0 0
    %755 = vmatprep.subr.bf16.mxu0 0
    %756 = vmatpush2.bf16.msra.mxu0 0
    %757 = vmatprep.subr.bf16.mxu0 0
    %758 = vmatpush2.bf16.msra.mxu0 0
    %759 = vmatprep.subr.bf16.mxu0 0
    %760 = vmatpush2.bf16.msra.mxu0 0
    %761 = vmatprep.subr.bf16.mxu0 0
    %762 = vmatpush2.bf16.msra.mxu0 0
    %763 = vmatprep.subr.bf16.mxu0 0
    %764 = vmatpush2.bf16.msra.mxu0 0
    %765 = vmatprep.subr.bf16.mxu0 0
    %766 = vmatpush2.bf16.msra.mxu0 0
    %767 = vmatprep.subr.bf16.mxu0 0
    %768 = vmatpush2.bf16.msra.mxu0 0
    %769 = vmatprep.mubr.bf16.mxu0 0
    %770 = vmatmul.mubr.bf16.gmra.mxu0 %v735
    %v771 = vpop.f32.mrf.mxu0
    %v772 = vadd.f32 0.0, %v771
    %v773 = vpop.f32.mrf.mxu0
    %v774 = vadd.f32 0.0, %v773
    %v775 = vpop.f32.mrf.mxu0
    %v776 = vpop.f32.mrf.mxu0
    %777 = vdwg.mxu0
    %778 = vmatprep.subr.bf16.mxu0 %v365
    %779 = vmatpush1.bf16.msra.mxu0 %v364
    %780 = vmatprep.subr.bf16.mxu0 %v361
    %781 = vmatpush1.bf16.msra.mxu0 %v360
    %782 = vmatprep.subr.bf16.mxu0 %v357
    %783 = vmatpush1.bf16.msra.mxu0 %v356
    %784 = vmatprep.subr.bf16.mxu0 %v353
    %785 = vmatpush1.bf16.msra.mxu0 %v352
    %786 = vmatprep.subr.bf16.mxu0 %v349
    %787 = vmatpush1.bf16.msra.mxu0 %v348
    %788 = vmatprep.subr.bf16.mxu0 %v345
    %789 = vmatpush1.bf16.msra.mxu0 %v344
    %790 = vmatprep.subr.bf16.mxu0 %v341
    %791 = vmatpush1.bf16.msra.mxu0 %v340
    %792 = vmatprep.subr.bf16.mxu0 %v337
    %793 = vmatpush1.bf16.msra.mxu0 %v336
    %794 = vmatprep.subr.bf16.mxu0 0
    %795 = vmatpush2.bf16.msra.mxu0 0
    %796 = vmatprep.subr.bf16.mxu0 0
    %797 = vmatpush2.bf16.msra.mxu0 0
    %798 = vmatprep.subr.bf16.mxu0 0
    %799 = vmatpush2.bf16.msra.mxu0 0
    %800 = vmatprep.subr.bf16.mxu0 0
    %801 = vmatpush2.bf16.msra.mxu0 0
    %802 = vmatprep.subr.bf16.mxu0 0
    %803 = vmatpush2.bf16.msra.mxu0 0
    %804 = vmatprep.subr.bf16.mxu0 0
    %805 = vmatpush2.bf16.msra.mxu0 0
    %806 = vmatprep.subr.bf16.mxu0 0
    %807 = vmatpush2.bf16.msra.mxu0 0
    %808 = vmatprep.subr.bf16.mxu0 0
    %809 = vmatpush2.bf16.msra.mxu0 0
    %810 = vmatprep.mubr.bf16.mxu0 0
    %811 = vmatmul.mubr.bf16.gmra.mxu0 %v735
    %v812 = vpop.f32.mrf.mxu0
    %v813 = vadd.f32 0.0, %v812
    %v814 = vpop.f32.mrf.mxu0
    %v815 = vadd.f32 0.0, %v814
    %v816 = vpop.f32.mrf.mxu0
    %v817 = vpop.f32.mrf.mxu0
    %818 = vdwg.mxu0
    %v823 = vrot.slane %v772, 6
    %v824 = vrot.slane %v774, 6
    %v825 = vrot.slane %v813, 6
    %v826 = vrot.slane %v815, 6
    %v827 = vrot.slane %v772, 7
    %v828 = vrot.slane %v774, 7
    %v829 = vrot.slane %v813, 7
    %v830 = vrot.slane %v815, 7
    %v839 = vadd.f32 %v155, %v823
    %v840 = vadd.f32 %v157, %v824
    %v841 = vadd.f32 %v198, %v825
    %v842 = vadd.f32 %v200, %v826
    %v843 = vadd.f32 %v159, %v827
    %v844 = vadd.f32 %v161, %v828
    %v845 = vadd.f32 %v202, %v829
    %v846 = vadd.f32 %v204, %v830
    %v847 = vxor.u32 %v839, 2147483648
    %v848 = vxor.u32 %v843, 2147483648
    %v849 = vmul.f32 %v847, 1.442695
    %v850 = vpow.pop %v849
    %v851 = vmul.f32 %v848, 1.442695
    %v852 = vpow.pop %v851
    %v853 = vadd.f32 %v850, 1.0
    %v854 = vadd.f32 %v852, 1.0
    %v855 = vrcp.pop %v853
    %v856 = vmul.f32 1.0, %v855
    %v857 = vrcp.pop %v854
    %v858 = vmul.f32 1.0, %v857
    %v859 = vxor.u32 %v840, 2147483648
    %v860 = vxor.u32 %v844, 2147483648
    %v861 = vmul.f32 %v859, 1.442695
    %v862 = vpow.pop %v861
    %v863 = vmul.f32 %v860, 1.442695
    %v864 = vpow.pop %v863
    %v865 = vadd.f32 %v862, 1.0
    %v866 = vadd.f32 %v864, 1.0
    %v867 = vrcp.pop %v865
    %v868 = vmul.f32 1.0, %v867
    %v869 = vrcp.pop %v866
    %v870 = vmul.f32 1.0, %v869
    %v871 = vtanh.pop %v841
    %v872 = vtanh.pop %v845
    %v873 = vxor.u32 %v842, 2147483648
    %v874 = vxor.u32 %v846, 2147483648
    %v875 = vmul.f32 %v873, 1.442695
    %v876 = vpow.pop %v875
    %v877 = vmul.f32 %v874, 1.442695
    %v878 = vpow.pop %v877
    %v879 = vadd.f32 %v876, 1.0
    %v880 = vadd.f32 %v878, 1.0
    %v881 = vrcp.pop %v879
    %v882 = vmul.f32 1.0, %v881
    %v883 = vrcp.pop %v880
    %v884 = vmul.f32 1.0, %v883
    %v887 = vrot.slane %v719, 7
    %v888 = vrot.slane %v720, 7
    %v891 = vmul.f32 %v868, %v887
    %v892 = vmul.f32 %v870, %v888
    %v893 = vmul.f32 %v856, %v871
    %v894 = vmul.f32 %v858, %v872
    %v895 = vadd.f32 %v891, %v893
    %v896 = vadd.f32 %v892, %v894
    %v897 = vtanh.pop %v895
    %v898 = vtanh.pop %v896
    %v899 = vmul.f32 %v882, %v897
    %v900 = vmul.f32 %v884, %v898
    %901 = vst [vmem:[#allocation2] sm:$0x4] %v899
    %902 = vst [vmem:[#allocation2 + $0x8] sm:$0x4] %v900
    %v903 = vpack.c.bf16 %v899, %v899
    %v904 = vpack.c.bf16 %v900, %v900
    %v907 = vunpack.c.l.b16 %v903
    %v908 = vunpack.c.l.b16 %v904
    %v909 = vrot.slane %v907, 2
    %v910 = vrot.slane %v908, 1
    %v911 = vsel %vm561, %v910, %v909
    %v912 = vpack.c.b16 %v911, %v911
    %914 = vmatprep.subr.bf16.mxu0 %v363
    %915 = vmatpush1.bf16.msra.mxu0 %v362
    %916 = vmatprep.subr.bf16.mxu0 %v359
    %917 = vmatpush1.bf16.msra.mxu0 %v358
    %918 = vmatprep.subr.bf16.mxu0 %v355
    %919 = vmatpush1.bf16.msra.mxu0 %v354
    %920 = vmatprep.subr.bf16.mxu0 %v351
    %921 = vmatpush1.bf16.msra.mxu0 %v350
    %922 = vmatprep.subr.bf16.mxu0 %v347
    %923 = vmatpush1.bf16.msra.mxu0 %v346
    %924 = vmatprep.subr.bf16.mxu0 %v343
    %925 = vmatpush1.bf16.msra.mxu0 %v342
    %926 = vmatprep.subr.bf16.mxu0 %v339
    %927 = vmatpush1.bf16.msra.mxu0 %v338
    %928 = vmatprep.subr.bf16.mxu0 %v335
    %929 = vmatpush1.bf16.msra.mxu0 %v334
    %930 = vmatprep.subr.bf16.mxu0 0
    %931 = vmatpush2.bf16.msra.mxu0 0
    %932 = vmatprep.subr.bf16.mxu0 0
    %933 = vmatpush2.bf16.msra.mxu0 0
    %934 = vmatprep.subr.bf16.mxu0 0
    %935 = vmatpush2.bf16.msra.mxu0 0
    %936 = vmatprep.subr.bf16.mxu0 0
    %937 = vmatpush2.bf16.msra.mxu0 0
    %938 = vmatprep.subr.bf16.mxu0 0
    %939 = vmatpush2.bf16.msra.mxu0 0
    %940 = vmatprep.subr.bf16.mxu0 0
    %941 = vmatpush2.bf16.msra.mxu0 0
    %942 = vmatprep.subr.bf16.mxu0 0
    %943 = vmatpush2.bf16.msra.mxu0 0
    %944 = vmatprep.subr.bf16.mxu0 0
    %945 = vmatpush2.bf16.msra.mxu0 0
    %946 = vmatprep.mubr.bf16.mxu0 0
    %947 = vmatmul.mubr.bf16.gmra.mxu0 %v912
    %v948 = vpop.f32.mrf.mxu0
    %v949 = vadd.f32 0.0, %v948
    %v950 = vpop.f32.mrf.mxu0
    %v951 = vadd.f32 0.0, %v950
    %v952 = vpop.f32.mrf.mxu0
    %v953 = vpop.f32.mrf.mxu0
    %954 = vdwg.mxu0
    %955 = vmatprep.subr.bf16.mxu0 %v365
    %956 = vmatpush1.bf16.msra.mxu0 %v364
    %957 = vmatprep.subr.bf16.mxu0 %v361
    %958 = vmatpush1.bf16.msra.mxu0 %v360
    %959 = vmatprep.subr.bf16.mxu0 %v357
    %960 = vmatpush1.bf16.msra.mxu0 %v356
    %961 = vmatprep.subr.bf16.mxu0 %v353
    %962 = vmatpush1.bf16.msra.mxu0 %v352
    %963 = vmatprep.subr.bf16.mxu0 %v349
    %964 = vmatpush1.bf16.msra.mxu0 %v348
    %965 = vmatprep.subr.bf16.mxu0 %v345
    %966 = vmatpush1.bf16.msra.mxu0 %v344
    %967 = vmatprep.subr.bf16.mxu0 %v341
    %968 = vmatpush1.bf16.msra.mxu0 %v340
    %969 = vmatprep.subr.bf16.mxu0 %v337
    %970 = vmatpush1.bf16.msra.mxu0 %v336
    %971 = vmatprep.subr.bf16.mxu0 0
    %972 = vmatpush2.bf16.msra.mxu0 0
    %973 = vmatprep.subr.bf16.mxu0 0
    %974 = vmatpush2.bf16.msra.mxu0 0
    %975 = vmatprep.subr.bf16.mxu0 0
    %976 = vmatpush2.bf16.msra.mxu0 0
    %977 = vmatprep.subr.bf16.mxu0 0
    %978 = vmatpush2.bf16.msra.mxu0 0
    %979 = vmatprep.subr.bf16.mxu0 0
    %980 = vmatpush2.bf16.msra.mxu0 0
    %981 = vmatprep.subr.bf16.mxu0 0
    %982 = vmatpush2.bf16.msra.mxu0 0
    %983 = vmatprep.subr.bf16.mxu0 0
    %984 = vmatpush2.bf16.msra.mxu0 0
    %985 = vmatprep.subr.bf16.mxu0 0
    %986 = vmatpush2.bf16.msra.mxu0 0
    %987 = vmatprep.mubr.bf16.mxu0 0
    %988 = vmatmul.mubr.bf16.gmra.mxu0 %v912
    %v989 = vpop.f32.mrf.mxu0
    %v990 = vadd.f32 0.0, %v989
    %v991 = vpop.f32.mrf.mxu0
    %v992 = vadd.f32 0.0, %v991
    %v993 = vpop.f32.mrf.mxu0
    %v994 = vpop.f32.mrf.mxu0
    %995 = vdwg.mxu0
    %v1000 = vrot.slane %v949, 5
    %v1001 = vrot.slane %v951, 5
    %v1002 = vrot.slane %v990, 5
    %v1003 = vrot.slane %v992, 5
    %v1004 = vrot.slane %v949, 6
    %v1005 = vrot.slane %v951, 6
    %v1006 = vrot.slane %v990, 6
    %v1007 = vrot.slane %v992, 6
    %v1016 = vadd.f32 %v155, %v1000
    %v1017 = vadd.f32 %v157, %v1001
    %v1018 = vadd.f32 %v198, %v1002
    %v1019 = vadd.f32 %v200, %v1003
    %v1020 = vadd.f32 %v159, %v1004
    %v1021 = vadd.f32 %v161, %v1005
    %v1022 = vadd.f32 %v202, %v1006
    %v1023 = vadd.f32 %v204, %v1007
    %v1024 = vxor.u32 %v1016, 2147483648
    %v1025 = vxor.u32 %v1020, 2147483648
    %v1026 = vmul.f32 %v1024, 1.442695
    %v1027 = vpow.pop %v1026
    %v1028 = vmul.f32 %v1025, 1.442695
    %v1029 = vpow.pop %v1028
    %v1030 = vadd.f32 %v1027, 1.0
    %v1031 = vadd.f32 %v1029, 1.0
    %v1032 = vrcp.pop %v1030
    %v1033 = vmul.f32 1.0, %v1032
    %v1034 = vrcp.pop %v1031
    %v1035 = vmul.f32 1.0, %v1034
    %v1036 = vxor.u32 %v1017, 2147483648
    %v1037 = vxor.u32 %v1021, 2147483648
    %v1038 = vmul.f32 %v1036, 1.442695
    %v1039 = vpow.pop %v1038
    %v1040 = vmul.f32 %v1037, 1.442695
    %v1041 = vpow.pop %v1040
    %v1042 = vadd.f32 %v1039, 1.0
    %v1043 = vadd.f32 %v1041, 1.0
    %v1044 = vrcp.pop %v1042
    %v1045 = vmul.f32 1.0, %v1044
    %v1046 = vrcp.pop %v1043
    %v1047 = vmul.f32 1.0, %v1046
    %v1048 = vtanh.pop %v1018
    %v1049 = vtanh.pop %v1022
    %v1050 = vxor.u32 %v1019, 2147483648
    %v1051 = vxor.u32 %v1023, 2147483648
    %v1052 = vmul.f32 %v1050, 1.442695
    %v1053 = vpow.pop %v1052
    %v1054 = vmul.f32 %v1051, 1.442695
    %v1055 = vpow.pop %v1054
    %v1056 = vadd.f32 %v1053, 1.0
    %v1057 = vadd.f32 %v1055, 1.0
    %v1058 = vrcp.pop %v1056
    %v1059 = vmul.f32 1.0, %v1058
    %v1060 = vrcp.pop %v1057
    %v1061 = vmul.f32 1.0, %v1060
    %v1064 = vrot.slane %v895, 7
    %v1065 = vrot.slane %v896, 7
    %v1068 = vmul.f32 %v1045, %v1064
    %v1069 = vmul.f32 %v1047, %v1065
    %v1070 = vmul.f32 %v1033, %v1048
    %v1071 = vmul.f32 %v1035, %v1049
    %v1072 = vadd.f32 %v1068, %v1070
    %v1073 = vadd.f32 %v1069, %v1071
    %v1074 = vtanh.pop %v1072
    %v1075 = vtanh.pop %v1073
    %v1076 = vmul.f32 %v1059, %v1074
    %v1077 = vmul.f32 %v1061, %v1075
    %1078 = vst [vmem:[#allocation2] sm:$0x8] %v1076
    %1079 = vst [vmem:[#allocation2 + $0x8] sm:$0x8] %v1077
    %v1080 = vpack.c.bf16 %v1076, %v1076
    %v1081 = vpack.c.bf16 %v1077, %v1077
    %v1084 = vunpack.c.l.b16 %v1080
    %v1085 = vunpack.c.l.b16 %v1081
    %v1086 = vrot.slane %v1084, 3
    %v1087 = vrot.slane %v1085, 2
    %v1088 = vsel %vm561, %v1087, %v1086
    %v1089 = vpack.c.b16 %v1088, %v1088
    %1091 = vmatprep.subr.bf16.mxu0 %v363
    %1092 = vmatpush1.bf16.msra.mxu0 %v362
    %1093 = vmatprep.subr.bf16.mxu0 %v359
    %1094 = vmatpush1.bf16.msra.mxu0 %v358
    %1095 = vmatprep.subr.bf16.mxu0 %v355
    %1096 = vmatpush1.bf16.msra.mxu0 %v354
    %1097 = vmatprep.subr.bf16.mxu0 %v351
    %1098 = vmatpush1.bf16.msra.mxu0 %v350
    %1099 = vmatprep.subr.bf16.mxu0 %v347
    %1100 = vmatpush1.bf16.msra.mxu0 %v346
    %1101 = vmatprep.subr.bf16.mxu0 %v343
    %1102 = vmatpush1.bf16.msra.mxu0 %v342
    %1103 = vmatprep.subr.bf16.mxu0 %v339
    %1104 = vmatpush1.bf16.msra.mxu0 %v338
    %1105 = vmatprep.subr.bf16.mxu0 %v335
    %1106 = vmatpush1.bf16.msra.mxu0 %v334
    %1107 = vmatprep.subr.bf16.mxu0 0
    %1108 = vmatpush2.bf16.msra.mxu0 0
    %1109 = vmatprep.subr.bf16.mxu0 0
    %1110 = vmatpush2.bf16.msra.mxu0 0
    %1111 = vmatprep.subr.bf16.mxu0 0
    %1112 = vmatpush2.bf16.msra.mxu0 0
    %1113 = vmatprep.subr.bf16.mxu0 0
    %1114 = vmatpush2.bf16.msra.mxu0 0
    %1115 = vmatprep.subr.bf16.mxu0 0
    %1116 = vmatpush2.bf16.msra.mxu0 0
    %1117 = vmatprep.subr.bf16.mxu0 0
    %1118 = vmatpush2.bf16.msra.mxu0 0
    %1119 = vmatprep.subr.bf16.mxu0 0
    %1120 = vmatpush2.bf16.msra.mxu0 0
    %1121 = vmatprep.subr.bf16.mxu0 0
    %1122 = vmatpush2.bf16.msra.mxu0 0
    %1123 = vmatprep.mubr.bf16.mxu0 0
    %1124 = vmatmul.mubr.bf16.gmra.mxu0 %v1089
    %v1125 = vpop.f32.mrf.mxu0
    %v1126 = vadd.f32 0.0, %v1125
    %v1127 = vpop.f32.mrf.mxu0
    %v1128 = vadd.f32 0.0, %v1127
    %v1129 = vpop.f32.mrf.mxu0
    %v1130 = vpop.f32.mrf.mxu0
    %1131 = vdwg.mxu0
    %1132 = vmatprep.subr.bf16.mxu0 %v365
    %1133 = vmatpush1.bf16.msra.mxu0 %v364
    %1134 = vmatprep.subr.bf16.mxu0 %v361
    %1135 = vmatpush1.bf16.msra.mxu0 %v360
    %1136 = vmatprep.subr.bf16.mxu0 %v357
    %1137 = vmatpush1.bf16.msra.mxu0 %v356
    %1138 = vmatprep.subr.bf16.mxu0 %v353
    %1139 = vmatpush1.bf16.msra.mxu0 %v352
    %1140 = vmatprep.subr.bf16.mxu0 %v349
    %1141 = vmatpush1.bf16.msra.mxu0 %v348
    %1142 = vmatprep.subr.bf16.mxu0 %v345
    %1143 = vmatpush1.bf16.msra.mxu0 %v344
    %1144 = vmatprep.subr.bf16.mxu0 %v341
    %1145 = vmatpush1.bf16.msra.mxu0 %v340
    %1146 = vmatprep.subr.bf16.mxu0 %v337
    %1147 = vmatpush1.bf16.msra.mxu0 %v336
    %1148 = vmatprep.subr.bf16.mxu0 0
    %1149 = vmatpush2.bf16.msra.mxu0 0
    %1150 = vmatprep.subr.bf16.mxu0 0
    %1151 = vmatpush2.bf16.msra.mxu0 0
    %1152 = vmatprep.subr.bf16.mxu0 0
    %1153 = vmatpush2.bf16.msra.mxu0 0
    %1154 = vmatprep.subr.bf16.mxu0 0
    %1155 = vmatpush2.bf16.msra.mxu0 0
    %1156 = vmatprep.subr.bf16.mxu0 0
    %1157 = vmatpush2.bf16.msra.mxu0 0
    %1158 = vmatprep.subr.bf16.mxu0 0
    %1159 = vmatpush2.bf16.msra.mxu0 0
    %1160 = vmatprep.subr.bf16.mxu0 0
    %1161 = vmatpush2.bf16.msra.mxu0 0
    %1162 = vmatprep.subr.bf16.mxu0 0
    %1163 = vmatpush2.bf16.msra.mxu0 0
    %1164 = vmatprep.mubr.bf16.mxu0 0
    %1165 = vmatmul.mubr.bf16.gmra.mxu0 %v1089
    %v1166 = vpop.f32.mrf.mxu0
    %v1167 = vadd.f32 0.0, %v1166
    %v1168 = vpop.f32.mrf.mxu0
    %v1169 = vadd.f32 0.0, %v1168
    %v1170 = vpop.f32.mrf.mxu0
    %v1171 = vpop.f32.mrf.mxu0
    %1172 = vdwg.mxu0
    %v1177 = vrot.slane %v1126, 4
    %v1178 = vrot.slane %v1128, 4
    %v1179 = vrot.slane %v1167, 4
    %v1180 = vrot.slane %v1169, 4
    %v1181 = vrot.slane %v1126, 5
    %v1182 = vrot.slane %v1128, 5
    %v1183 = vrot.slane %v1167, 5
    %v1184 = vrot.slane %v1169, 5
    %v1193 = vadd.f32 %v155, %v1177
    %v1194 = vadd.f32 %v157, %v1178
    %v1195 = vadd.f32 %v198, %v1179
    %v1196 = vadd.f32 %v200, %v1180
    %v1197 = vadd.f32 %v159, %v1181
    %v1198 = vadd.f32 %v161, %v1182
    %v1199 = vadd.f32 %v202, %v1183
    %v1200 = vadd.f32 %v204, %v1184
    %v1201 = vxor.u32 %v1193, 2147483648
    %v1202 = vxor.u32 %v1197, 2147483648
    %v1203 = vmul.f32 %v1201, 1.442695
    %v1204 = vpow.pop %v1203
    %v1205 = vmul.f32 %v1202, 1.442695
    %v1206 = vpow.pop %v1205
    %v1207 = vadd.f32 %v1204, 1.0
    %v1208 = vadd.f32 %v1206, 1.0
    %v1209 = vrcp.pop %v1207
    %v1210 = vmul.f32 1.0, %v1209
    %v1211 = vrcp.pop %v1208
    %v1212 = vmul.f32 1.0, %v1211
    %v1213 = vxor.u32 %v1194, 2147483648
    %v1214 = vxor.u32 %v1198, 2147483648
    %v1215 = vmul.f32 %v1213, 1.442695
    %v1216 = vpow.pop %v1215
    %v1217 = vmul.f32 %v1214, 1.442695
    %v1218 = vpow.pop %v1217
    %v1219 = vadd.f32 %v1216, 1.0
    %v1220 = vadd.f32 %v1218, 1.0
    %v1221 = vrcp.pop %v1219
    %v1222 = vmul.f32 1.0, %v1221
    %v1223 = vrcp.pop %v1220
    %v1224 = vmul.f32 1.0, %v1223
    %v1225 = vtanh.pop %v1195
    %v1226 = vtanh.pop %v1199
    %v1227 = vxor.u32 %v1196, 2147483648
    %v1228 = vxor.u32 %v1200, 2147483648
    %v1229 = vmul.f32 %v1227, 1.442695
    %v1230 = vpow.pop %v1229
    %v1231 = vmul.f32 %v1228, 1.442695
    %v1232 = vpow.pop %v1231
    %v1233 = vadd.f32 %v1230, 1.0
    %v1234 = vadd.f32 %v1232, 1.0
    %v1235 = vrcp.pop %v1233
    %v1236 = vmul.f32 1.0, %v1235
    %v1237 = vrcp.pop %v1234
    %v1238 = vmul.f32 1.0, %v1237
    %v1241 = vrot.slane %v1072, 7
    %v1242 = vrot.slane %v1073, 7
    %v1245 = vmul.f32 %v1222, %v1241
    %v1246 = vmul.f32 %v1224, %v1242
    %v1247 = vmul.f32 %v1210, %v1225
    %v1248 = vmul.f32 %v1212, %v1226
    %v1249 = vadd.f32 %v1245, %v1247
    %v1250 = vadd.f32 %v1246, %v1248
    %v1251 = vtanh.pop %v1249
    %v1252 = vtanh.pop %v1250
    %v1253 = vmul.f32 %v1236, %v1251
    %v1254 = vmul.f32 %v1238, %v1252
    %1255 = vst [vmem:[#allocation2] sm:$0x10] %v1253
    %1256 = vst [vmem:[#allocation2 + $0x8] sm:$0x10] %v1254
    %v1257 = vpack.c.bf16 %v1253, %v1253
    %v1258 = vpack.c.bf16 %v1254, %v1254
    %v1261 = vunpack.c.l.b16 %v1257
    %v1262 = vunpack.c.l.b16 %v1258
    %v1263 = vrot.slane %v1261, 4
    %v1264 = vrot.slane %v1262, 3
    %v1265 = vsel %vm561, %v1264, %v1263
    %v1266 = vpack.c.b16 %v1265, %v1265
    %1268 = vmatprep.subr.bf16.mxu0 %v363
    %1269 = vmatpush1.bf16.msra.mxu0 %v362
    %1270 = vmatprep.subr.bf16.mxu0 %v359
    %1271 = vmatpush1.bf16.msra.mxu0 %v358
    %1272 = vmatprep.subr.bf16.mxu0 %v355
    %1273 = vmatpush1.bf16.msra.mxu0 %v354
    %1274 = vmatprep.subr.bf16.mxu0 %v351
    %1275 = vmatpush1.bf16.msra.mxu0 %v350
    %1276 = vmatprep.subr.bf16.mxu0 %v347
    %1277 = vmatpush1.bf16.msra.mxu0 %v346
    %1278 = vmatprep.subr.bf16.mxu0 %v343
    %1279 = vmatpush1.bf16.msra.mxu0 %v342
    %1280 = vmatprep.subr.bf16.mxu0 %v339
    %1281 = vmatpush1.bf16.msra.mxu0 %v338
    %1282 = vmatprep.subr.bf16.mxu0 %v335
    %1283 = vmatpush1.bf16.msra.mxu0 %v334
    %1284 = vmatprep.subr.bf16.mxu0 0
    %1285 = vmatpush2.bf16.msra.mxu0 0
    %1286 = vmatprep.subr.bf16.mxu0 0
    %1287 = vmatpush2.bf16.msra.mxu0 0
    %1288 = vmatprep.subr.bf16.mxu0 0
    %1289 = vmatpush2.bf16.msra.mxu0 0
    %1290 = vmatprep.subr.bf16.mxu0 0
    %1291 = vmatpush2.bf16.msra.mxu0 0
    %1292 = vmatprep.subr.bf16.mxu0 0
    %1293 = vmatpush2.bf16.msra.mxu0 0
    %1294 = vmatprep.subr.bf16.mxu0 0
    %1295 = vmatpush2.bf16.msra.mxu0 0
    %1296 = vmatprep.subr.bf16.mxu0 0
    %1297 = vmatpush2.bf16.msra.mxu0 0
    %1298 = vmatprep.subr.bf16.mxu0 0
    %1299 = vmatpush2.bf16.msra.mxu0 0
    %1300 = vmatprep.mubr.bf16.mxu0 0
    %1301 = vmatmul.mubr.bf16.gmra.mxu0 %v1266
    %v1302 = vpop.f32.mrf.mxu0
    %v1303 = vadd.f32 0.0, %v1302
    %v1304 = vpop.f32.mrf.mxu0
    %v1305 = vadd.f32 0.0, %v1304
    %v1306 = vpop.f32.mrf.mxu0
    %v1307 = vpop.f32.mrf.mxu0
    %1308 = vdwg.mxu0
    %1309 = vmatprep.subr.bf16.mxu0 %v365
    %1310 = vmatpush1.bf16.msra.mxu0 %v364
    %1311 = vmatprep.subr.bf16.mxu0 %v361
    %1312 = vmatpush1.bf16.msra.mxu0 %v360
    %1313 = vmatprep.subr.bf16.mxu0 %v357
    %1314 = vmatpush1.bf16.msra.mxu0 %v356
    %1315 = vmatprep.subr.bf16.mxu0 %v353
    %1316 = vmatpush1.bf16.msra.mxu0 %v352
    %1317 = vmatprep.subr.bf16.mxu0 %v349
    %1318 = vmatpush1.bf16.msra.mxu0 %v348
    %1319 = vmatprep.subr.bf16.mxu0 %v345
    %1320 = vmatpush1.bf16.msra.mxu0 %v344
    %1321 = vmatprep.subr.bf16.mxu0 %v341
    %1322 = vmatpush1.bf16.msra.mxu0 %v340
    %1323 = vmatprep.subr.bf16.mxu0 %v337
    %1324 = vmatpush1.bf16.msra.mxu0 %v336
    %1325 = vmatprep.subr.bf16.mxu0 0
    %1326 = vmatpush2.bf16.msra.mxu0 0
    %1327 = vmatprep.subr.bf16.mxu0 0
    %1328 = vmatpush2.bf16.msra.mxu0 0
    %1329 = vmatprep.subr.bf16.mxu0 0
    %1330 = vmatpush2.bf16.msra.mxu0 0
    %1331 = vmatprep.subr.bf16.mxu0 0
    %1332 = vmatpush2.bf16.msra.mxu0 0
    %1333 = vmatprep.subr.bf16.mxu0 0
    %1334 = vmatpush2.bf16.msra.mxu0 0
    %1335 = vmatprep.subr.bf16.mxu0 0
    %1336 = vmatpush2.bf16.msra.mxu0 0
    %1337 = vmatprep.subr.bf16.mxu0 0
    %1338 = vmatpush2.bf16.msra.mxu0 0
    %1339 = vmatprep.subr.bf16.mxu0 0
    %1340 = vmatpush2.bf16.msra.mxu0 0
    %1341 = vmatprep.mubr.bf16.mxu0 0
    %1342 = vmatmul.mubr.bf16.gmra.mxu0 %v1266
    %v1343 = vpop.f32.mrf.mxu0
    %v1344 = vadd.f32 0.0, %v1343
    %v1345 = vpop.f32.mrf.mxu0
    %v1346 = vadd.f32 0.0, %v1345
    %v1347 = vpop.f32.mrf.mxu0
    %v1348 = vpop.f32.mrf.mxu0
    %1349 = vdwg.mxu0
    %v1354 = vrot.slane %v1303, 3
    %v1355 = vrot.slane %v1305, 3
    %v1356 = vrot.slane %v1344, 3
    %v1357 = vrot.slane %v1346, 3
    %v1358 = vrot.slane %v1303, 4
    %v1359 = vrot.slane %v1305, 4
    %v1360 = vrot.slane %v1344, 4
    %v1361 = vrot.slane %v1346, 4
    %v1370 = vadd.f32 %v155, %v1354
    %v1371 = vadd.f32 %v157, %v1355
    %v1372 = vadd.f32 %v198, %v1356
    %v1373 = vadd.f32 %v200, %v1357
    %v1374 = vadd.f32 %v159, %v1358
    %v1375 = vadd.f32 %v161, %v1359
    %v1376 = vadd.f32 %v202, %v1360
    %v1377 = vadd.f32 %v204, %v1361
    %v1378 = vxor.u32 %v1370, 2147483648
    %v1379 = vxor.u32 %v1374, 2147483648
    %v1380 = vmul.f32 %v1378, 1.442695
    %v1381 = vpow.pop %v1380
    %v1382 = vmul.f32 %v1379, 1.442695
    %v1383 = vpow.pop %v1382
    %v1384 = vadd.f32 %v1381, 1.0
    %v1385 = vadd.f32 %v1383, 1.0
    %v1386 = vrcp.pop %v1384
    %v1387 = vmul.f32 1.0, %v1386
    %v1388 = vrcp.pop %v1385
    %v1389 = vmul.f32 1.0, %v1388
    %v1390 = vxor.u32 %v1371, 2147483648
    %v1391 = vxor.u32 %v1375, 2147483648
    %v1392 = vmul.f32 %v1390, 1.442695
    %v1393 = vpow.pop %v1392
    %v1394 = vmul.f32 %v1391, 1.442695
    %v1395 = vpow.pop %v1394
    %v1396 = vadd.f32 %v1393, 1.0
    %v1397 = vadd.f32 %v1395, 1.0
    %v1398 = vrcp.pop %v1396
    %v1399 = vmul.f32 1.0, %v1398
    %v1400 = vrcp.pop %v1397
    %v1401 = vmul.f32 1.0, %v1400
    %v1402 = vtanh.pop %v1372
    %v1403 = vtanh.pop %v1376
    %v1404 = vxor.u32 %v1373, 2147483648
    %v1405 = vxor.u32 %v1377, 2147483648
    %v1406 = vmul.f32 %v1404, 1.442695
    %v1407 = vpow.pop %v1406
    %v1408 = vmul.f32 %v1405, 1.442695
    %v1409 = vpow.pop %v1408
    %v1410 = vadd.f32 %v1407, 1.0
    %v1411 = vadd.f32 %v1409, 1.0
    %v1412 = vrcp.pop %v1410
    %v1413 = vmul.f32 1.0, %v1412
    %v1414 = vrcp.pop %v1411
    %v1415 = vmul.f32 1.0, %v1414
    %v1418 = vrot.slane %v1249, 7
    %v1419 = vrot.slane %v1250, 7
    %v1422 = vmul.f32 %v1399, %v1418
    %v1423 = vmul.f32 %v1401, %v1419
    %v1424 = vmul.f32 %v1387, %v1402
    %v1425 = vmul.f32 %v1389, %v1403
    %v1426 = vadd.f32 %v1422, %v1424
    %v1427 = vadd.f32 %v1423, %v1425
    %v1428 = vtanh.pop %v1426
    %v1429 = vtanh.pop %v1427
    %v1430 = vmul.f32 %v1413, %v1428
    %v1431 = vmul.f32 %v1415, %v1429
    %1432 = vst [vmem:[#allocation2] sm:$0x20] %v1430
    %1433 = vst [vmem:[#allocation2 + $0x8] sm:$0x20] %v1431
    %v1434 = vpack.c.bf16 %v1430, %v1430
    %v1435 = vpack.c.bf16 %v1431, %v1431
    %v1438 = vunpack.c.l.b16 %v1434
    %v1439 = vunpack.c.l.b16 %v1435
    %v1440 = vrot.slane %v1438, 5
    %v1441 = vrot.slane %v1439, 4
    %v1442 = vsel %vm561, %v1441, %v1440
    %v1443 = vpack.c.b16 %v1442, %v1442
    %1445 = vmatprep.subr.bf16.mxu0 %v363
    %1446 = vmatpush1.bf16.msra.mxu0 %v362
    %1447 = vmatprep.subr.bf16.mxu0 %v359
    %1448 = vmatpush1.bf16.msra.mxu0 %v358
    %1449 = vmatprep.subr.bf16.mxu0 %v355
    %1450 = vmatpush1.bf16.msra.mxu0 %v354
    %1451 = vmatprep.subr.bf16.mxu0 %v351
    %1452 = vmatpush1.bf16.msra.mxu0 %v350
    %1453 = vmatprep.subr.bf16.mxu0 %v347
    %1454 = vmatpush1.bf16.msra.mxu0 %v346
    %1455 = vmatprep.subr.bf16.mxu0 %v343
    %1456 = vmatpush1.bf16.msra.mxu0 %v342
    %1457 = vmatprep.subr.bf16.mxu0 %v339
    %1458 = vmatpush1.bf16.msra.mxu0 %v338
    %1459 = vmatprep.subr.bf16.mxu0 %v335
    %1460 = vmatpush1.bf16.msra.mxu0 %v334
    %1461 = vmatprep.subr.bf16.mxu0 0
    %1462 = vmatpush2.bf16.msra.mxu0 0
    %1463 = vmatprep.subr.bf16.mxu0 0
    %1464 = vmatpush2.bf16.msra.mxu0 0
    %1465 = vmatprep.subr.bf16.mxu0 0
    %1466 = vmatpush2.bf16.msra.mxu0 0
    %1467 = vmatprep.subr.bf16.mxu0 0
    %1468 = vmatpush2.bf16.msra.mxu0 0
    %1469 = vmatprep.subr.bf16.mxu0 0
    %1470 = vmatpush2.bf16.msra.mxu0 0
    %1471 = vmatprep.subr.bf16.mxu0 0
    %1472 = vmatpush2.bf16.msra.mxu0 0
    %1473 = vmatprep.subr.bf16.mxu0 0
    %1474 = vmatpush2.bf16.msra.mxu0 0
    %1475 = vmatprep.subr.bf16.mxu0 0
    %1476 = vmatpush2.bf16.msra.mxu0 0
    %1477 = vmatprep.mubr.bf16.mxu0 0
    %1478 = vmatmul.mubr.bf16.gmra.mxu0 %v1443
    %v1479 = vpop.f32.mrf.mxu0
    %v1480 = vadd.f32 0.0, %v1479
    %v1481 = vpop.f32.mrf.mxu0
    %v1482 = vadd.f32 0.0, %v1481
    %v1483 = vpop.f32.mrf.mxu0
    %v1484 = vpop.f32.mrf.mxu0
    %1485 = vdwg.mxu0
    %1486 = vmatprep.subr.bf16.mxu0 %v365
    %1487 = vmatpush1.bf16.msra.mxu0 %v364
    %1488 = vmatprep.subr.bf16.mxu0 %v361
    %1489 = vmatpush1.bf16.msra.mxu0 %v360
    %1490 = vmatprep.subr.bf16.mxu0 %v357
    %1491 = vmatpush1.bf16.msra.mxu0 %v356
    %1492 = vmatprep.subr.bf16.mxu0 %v353
    %1493 = vmatpush1.bf16.msra.mxu0 %v352
    %1494 = vmatprep.subr.bf16.mxu0 %v349
    %1495 = vmatpush1.bf16.msra.mxu0 %v348
    %1496 = vmatprep.subr.bf16.mxu0 %v345
    %1497 = vmatpush1.bf16.msra.mxu0 %v344
    %1498 = vmatprep.subr.bf16.mxu0 %v341
    %1499 = vmatpush1.bf16.msra.mxu0 %v340
    %1500 = vmatprep.subr.bf16.mxu0 %v337
    %1501 = vmatpush1.bf16.msra.mxu0 %v336
    %1502 = vmatprep.subr.bf16.mxu0 0
    %1503 = vmatpush2.bf16.msra.mxu0 0
    %1504 = vmatprep.subr.bf16.mxu0 0
    %1505 = vmatpush2.bf16.msra.mxu0 0
    %1506 = vmatprep.subr.bf16.mxu0 0
    %1507 = vmatpush2.bf16.msra.mxu0 0
    %1508 = vmatprep.subr.bf16.mxu0 0
    %1509 = vmatpush2.bf16.msra.mxu0 0
    %1510 = vmatprep.subr.bf16.mxu0 0
    %1511 = vmatpush2.bf16.msra.mxu0 0
    %1512 = vmatprep.subr.bf16.mxu0 0
    %1513 = vmatpush2.bf16.msra.mxu0 0
    %1514 = vmatprep.subr.bf16.mxu0 0
    %1515 = vmatpush2.bf16.msra.mxu0 0
    %1516 = vmatprep.subr.bf16.mxu0 0
    %1517 = vmatpush2.bf16.msra.mxu0 0
    %1518 = vmatprep.mubr.bf16.mxu0 0
    %1519 = vmatmul.mubr.bf16.gmra.mxu0 %v1443
    %v1520 = vpop.f32.mrf.mxu0
    %v1521 = vadd.f32 0.0, %v1520
    %v1522 = vpop.f32.mrf.mxu0
    %v1523 = vadd.f32 0.0, %v1522
    %v1524 = vpop.f32.mrf.mxu0
    %v1525 = vpop.f32.mrf.mxu0
    %1526 = vdwg.mxu0
    %v1531 = vrot.slane %v1480, 2
    %v1532 = vrot.slane %v1482, 2
    %v1533 = vrot.slane %v1521, 2
    %v1534 = vrot.slane %v1523, 2
    %v1535 = vrot.slane %v1480, 3
    %v1536 = vrot.slane %v1482, 3
    %v1537 = vrot.slane %v1521, 3
    %v1538 = vrot.slane %v1523, 3
    %v1547 = vadd.f32 %v155, %v1531
    %v1548 = vadd.f32 %v157, %v1532
    %v1549 = vadd.f32 %v198, %v1533
    %v1550 = vadd.f32 %v200, %v1534
    %v1551 = vadd.f32 %v159, %v1535
    %v1552 = vadd.f32 %v161, %v1536
    %v1553 = vadd.f32 %v202, %v1537
    %v1554 = vadd.f32 %v204, %v1538
    %v1555 = vxor.u32 %v1547, 2147483648
    %v1556 = vxor.u32 %v1551, 2147483648
    %v1557 = vmul.f32 %v1555, 1.442695
    %v1558 = vpow.pop %v1557
    %v1559 = vmul.f32 %v1556, 1.442695
    %v1560 = vpow.pop %v1559
    %v1561 = vadd.f32 %v1558, 1.0
    %v1562 = vadd.f32 %v1560, 1.0
    %v1563 = vrcp.pop %v1561
    %v1564 = vmul.f32 1.0, %v1563
    %v1565 = vrcp.pop %v1562
    %v1566 = vmul.f32 1.0, %v1565
    %v1567 = vxor.u32 %v1548, 2147483648
    %v1568 = vxor.u32 %v1552, 2147483648
    %v1569 = vmul.f32 %v1567, 1.442695
    %v1570 = vpow.pop %v1569
    %v1571 = vmul.f32 %v1568, 1.442695
    %v1572 = vpow.pop %v1571
    %v1573 = vadd.f32 %v1570, 1.0
    %v1574 = vadd.f32 %v1572, 1.0
    %v1575 = vrcp.pop %v1573
    %v1576 = vmul.f32 1.0, %v1575
    %v1577 = vrcp.pop %v1574
    %v1578 = vmul.f32 1.0, %v1577
    %v1579 = vtanh.pop %v1549
    %v1580 = vtanh.pop %v1553
    %v1581 = vxor.u32 %v1550, 2147483648
    %v1582 = vxor.u32 %v1554, 2147483648
    %v1583 = vmul.f32 %v1581, 1.442695
    %v1584 = vpow.pop %v1583
    %v1585 = vmul.f32 %v1582, 1.442695
    %v1586 = vpow.pop %v1585
    %v1587 = vadd.f32 %v1584, 1.0
    %v1588 = vadd.f32 %v1586, 1.0
    %v1589 = vrcp.pop %v1587
    %v1590 = vmul.f32 1.0, %v1589
    %v1591 = vrcp.pop %v1588
    %v1592 = vmul.f32 1.0, %v1591
    %v1595 = vrot.slane %v1426, 7
    %v1596 = vrot.slane %v1427, 7
    %v1599 = vmul.f32 %v1576, %v1595
    %v1600 = vmul.f32 %v1578, %v1596
    %v1601 = vmul.f32 %v1564, %v1579
    %v1602 = vmul.f32 %v1566, %v1580
    %v1603 = vadd.f32 %v1599, %v1601
    %v1604 = vadd.f32 %v1600, %v1602
    %v1605 = vtanh.pop %v1603
    %v1606 = vtanh.pop %v1604
    %v1607 = vmul.f32 %v1590, %v1605
    %v1608 = vmul.f32 %v1592, %v1606
    %1609 = vst [vmem:[#allocation2] sm:$0x40] %v1607
    %1610 = vst [vmem:[#allocation2 + $0x8] sm:$0x40] %v1608
    %v1611 = vpack.c.bf16 %v1607, %v1607
    %v1612 = vpack.c.bf16 %v1608, %v1608
    %v1615 = vunpack.c.l.b16 %v1611
    %v1616 = vunpack.c.l.b16 %v1612
    %v1617 = vrot.slane %v1615, 6
    %v1618 = vrot.slane %v1616, 5
    %v1619 = vsel %vm561, %v1618, %v1617
    %v1620 = vpack.c.b16 %v1619, %v1619
    %1622 = vmatprep.subr.bf16.mxu0 %v363
    %1623 = vmatpush1.bf16.msra.mxu0 %v362
    %1624 = vmatprep.subr.bf16.mxu0 %v359
    %1625 = vmatpush1.bf16.msra.mxu0 %v358
    %1626 = vmatprep.subr.bf16.mxu0 %v355
    %1627 = vmatpush1.bf16.msra.mxu0 %v354
    %1628 = vmatprep.subr.bf16.mxu0 %v351
    %1629 = vmatpush1.bf16.msra.mxu0 %v350
    %1630 = vmatprep.subr.bf16.mxu0 %v347
    %1631 = vmatpush1.bf16.msra.mxu0 %v346
    %1632 = vmatprep.subr.bf16.mxu0 %v343
    %1633 = vmatpush1.bf16.msra.mxu0 %v342
    %1634 = vmatprep.subr.bf16.mxu0 %v339
    %1635 = vmatpush1.bf16.msra.mxu0 %v338
    %1636 = vmatprep.subr.bf16.mxu0 %v335
    %1637 = vmatpush1.bf16.msra.mxu0 %v334
    %1638 = vmatprep.subr.bf16.mxu0 0
    %1639 = vmatpush2.bf16.msra.mxu0 0
    %1640 = vmatprep.subr.bf16.mxu0 0
    %1641 = vmatpush2.bf16.msra.mxu0 0
    %1642 = vmatprep.subr.bf16.mxu0 0
    %1643 = vmatpush2.bf16.msra.mxu0 0
    %1644 = vmatprep.subr.bf16.mxu0 0
    %1645 = vmatpush2.bf16.msra.mxu0 0
    %1646 = vmatprep.subr.bf16.mxu0 0
    %1647 = vmatpush2.bf16.msra.mxu0 0
    %1648 = vmatprep.subr.bf16.mxu0 0
    %1649 = vmatpush2.bf16.msra.mxu0 0
    %1650 = vmatprep.subr.bf16.mxu0 0
    %1651 = vmatpush2.bf16.msra.mxu0 0
    %1652 = vmatprep.subr.bf16.mxu0 0
    %1653 = vmatpush2.bf16.msra.mxu0 0
    %1654 = vmatprep.mubr.bf16.mxu0 0
    %1655 = vmatmul.mubr.bf16.gmra.mxu0 %v1620
    %v1656 = vpop.f32.mrf.mxu0
    %v1657 = vadd.f32 0.0, %v1656
    %v1658 = vpop.f32.mrf.mxu0
    %v1659 = vadd.f32 0.0, %v1658
    %v1660 = vpop.f32.mrf.mxu0
    %v1661 = vpop.f32.mrf.mxu0
    %1662 = vdwg.mxu0
    %1663 = vmatprep.subr.bf16.mxu0 %v365
    %1664 = vmatpush1.bf16.msra.mxu0 %v364
    %1665 = vmatprep.subr.bf16.mxu0 %v361
    %1666 = vmatpush1.bf16.msra.mxu0 %v360
    %1667 = vmatprep.subr.bf16.mxu0 %v357
    %1668 = vmatpush1.bf16.msra.mxu0 %v356
    %1669 = vmatprep.subr.bf16.mxu0 %v353
    %1670 = vmatpush1.bf16.msra.mxu0 %v352
    %1671 = vmatprep.subr.bf16.mxu0 %v349
    %1672 = vmatpush1.bf16.msra.mxu0 %v348
    %1673 = vmatprep.subr.bf16.mxu0 %v345
    %1674 = vmatpush1.bf16.msra.mxu0 %v344
    %1675 = vmatprep.subr.bf16.mxu0 %v341
    %1676 = vmatpush1.bf16.msra.mxu0 %v340
    %1677 = vmatprep.subr.bf16.mxu0 %v337
    %1678 = vmatpush1.bf16.msra.mxu0 %v336
    %1679 = vmatprep.subr.bf16.mxu0 0
    %1680 = vmatpush2.bf16.msra.mxu0 0
    %1681 = vmatprep.subr.bf16.mxu0 0
    %1682 = vmatpush2.bf16.msra.mxu0 0
    %1683 = vmatprep.subr.bf16.mxu0 0
    %1684 = vmatpush2.bf16.msra.mxu0 0
    %1685 = vmatprep.subr.bf16.mxu0 0
    %1686 = vmatpush2.bf16.msra.mxu0 0
    %1687 = vmatprep.subr.bf16.mxu0 0
    %1688 = vmatpush2.bf16.msra.mxu0 0
    %1689 = vmatprep.subr.bf16.mxu0 0
    %1690 = vmatpush2.bf16.msra.mxu0 0
    %1691 = vmatprep.subr.bf16.mxu0 0
    %1692 = vmatpush2.bf16.msra.mxu0 0
    %1693 = vmatprep.subr.bf16.mxu0 0
    %1694 = vmatpush2.bf16.msra.mxu0 0
    %1695 = vmatprep.mubr.bf16.mxu0 0
    %1696 = vmatmul.mubr.bf16.gmra.mxu0 %v1620
    %v1697 = vpop.f32.mrf.mxu0
    %v1698 = vadd.f32 0.0, %v1697
    %v1699 = vpop.f32.mrf.mxu0
    %v1700 = vadd.f32 0.0, %v1699
    %v1701 = vpop.f32.mrf.mxu0
    %v1702 = vpop.f32.mrf.mxu0
    %1703 = vdwg.mxu0
    %v1708 = vrot.slane %v1657, 1
    %v1709 = vrot.slane %v1659, 1
    %v1710 = vrot.slane %v1698, 1
    %v1711 = vrot.slane %v1700, 1
    %v1712 = vrot.slane %v1657, 2
    %v1713 = vrot.slane %v1659, 2
    %v1714 = vrot.slane %v1698, 2
    %v1715 = vrot.slane %v1700, 2
    %v1724 = vadd.f32 %v155, %v1708
    %v1725 = vadd.f32 %v157, %v1709
    %v1726 = vadd.f32 %v198, %v1710
    %v1727 = vadd.f32 %v200, %v1711
    %v1728 = vadd.f32 %v159, %v1712
    %v1729 = vadd.f32 %v161, %v1713
    %v1730 = vadd.f32 %v202, %v1714
    %v1731 = vadd.f32 %v204, %v1715
    %v1732 = vxor.u32 %v1724, 2147483648
    %v1733 = vxor.u32 %v1728, 2147483648
    %v1734 = vmul.f32 %v1732, 1.442695
    %v1735 = vpow.pop %v1734
    %v1736 = vmul.f32 %v1733, 1.442695
    %v1737 = vpow.pop %v1736
    %v1738 = vadd.f32 %v1735, 1.0
    %v1739 = vadd.f32 %v1737, 1.0
    %v1740 = vrcp.pop %v1738
    %v1741 = vmul.f32 1.0, %v1740
    %v1742 = vrcp.pop %v1739
    %v1743 = vmul.f32 1.0, %v1742
    %v1744 = vxor.u32 %v1725, 2147483648
    %v1745 = vxor.u32 %v1729, 2147483648
    %v1746 = vmul.f32 %v1744, 1.442695
    %v1747 = vpow.pop %v1746
    %v1748 = vmul.f32 %v1745, 1.442695
    %v1749 = vpow.pop %v1748
    %v1750 = vadd.f32 %v1747, 1.0
    %v1751 = vadd.f32 %v1749, 1.0
    %v1752 = vrcp.pop %v1750
    %v1753 = vmul.f32 1.0, %v1752
    %v1754 = vrcp.pop %v1751
    %v1755 = vmul.f32 1.0, %v1754
    %v1756 = vtanh.pop %v1726
    %v1757 = vtanh.pop %v1730
    %v1758 = vxor.u32 %v1727, 2147483648
    %v1759 = vxor.u32 %v1731, 2147483648
    %v1760 = vmul.f32 %v1758, 1.442695
    %v1761 = vpow.pop %v1760
    %v1762 = vmul.f32 %v1759, 1.442695
    %v1763 = vpow.pop %v1762
    %v1764 = vadd.f32 %v1761, 1.0
    %v1765 = vadd.f32 %v1763, 1.0
    %v1766 = vrcp.pop %v1764
    %v1767 = vmul.f32 1.0, %v1766
    %v1768 = vrcp.pop %v1765
    %v1769 = vmul.f32 1.0, %v1768
    %v1772 = vrot.slane %v1603, 7
    %v1773 = vrot.slane %v1604, 7
    %v1776 = vmul.f32 %v1753, %v1772
    %v1777 = vmul.f32 %v1755, %v1773
    %v1778 = vmul.f32 %v1741, %v1756
    %v1779 = vmul.f32 %v1743, %v1757
    %v1780 = vadd.f32 %v1776, %v1778
    %v1781 = vadd.f32 %v1777, %v1779
    %v1782 = vtanh.pop %v1780
    %v1783 = vtanh.pop %v1781
    %v1784 = vmul.f32 %v1767, %v1782
    %v1785 = vmul.f32 %v1769, %v1783
    %1786 = vst [vmem:[#allocation2] sm:$0x80] %v1784
    %1787 = vst [vmem:[#allocation2 + $0x8] sm:$0x80] %v1785
    %v1790 = vrot.slane %v1785, 7
    %1793 = vst [vmem:[#allocation9 - $0x7] sm:$0x80] %v1784
    %1794 = vst [vmem:[#allocation9 + $0x1] sm:$0x1] %v1790
    %v1797 = vrot.slane %v1781, 7
    %1800 = vst [vmem:[#allocation11 - $0x7] sm:$0x80] %v1780
    %1801 = vst [vmem:[#allocation11 + $0x1] sm:$0x1] %v1797
    %v1802 = vld [vmem:[#allocation2] sm:$0xff]
    %v1803 = vld [vmem:[#allocation2 + $0x8] sm:$0xff]
    %1804 = vst [vmem:[#allocation8] sm:$0xff] %v1802
    %1805 = vst [vmem:[#allocation8 + $0x8] sm:$0xff] %v1803
    %v1806 = vpack.c.bf16 %v1803, %v1802
    %v1807 = vld [vmem:[#allocation6] sm:$0xf]
    %v1808 = vld [vmem:[#allocation6 + $0x4] sm:$0xf]
    %v1809 = vld [vmem:[#allocation6 + $0x8] sm:$0xf]
    %v1810 = vld [vmem:[#allocation6 + $0xc] sm:$0xf]
    %v1811 = vld [vmem:[#allocation6 + $0x10] sm:$0xf]
    %v1812 = vld [vmem:[#allocation6 + $0x14] sm:$0xf]
    %v1813 = vld [vmem:[#allocation6 + $0x18] sm:$0xf]
    %v1814 = vld [vmem:[#allocation6 + $0x1c] sm:$0xf]
    %v1815 = vld [vmem:[#allocation6 + $0x20] sm:$0xf]
    %v1816 = vld [vmem:[#allocation6 + $0x24] sm:$0xf]
    %v1817 = vld [vmem:[#allocation6 + $0x28] sm:$0xf]
    %v1818 = vld [vmem:[#allocation6 + $0x2c] sm:$0xf]
    %v1819 = vld [vmem:[#allocation6 + $0x30] sm:$0xf]
    %v1820 = vld [vmem:[#allocation6 + $0x34] sm:$0xf]
    %v1821 = vld [vmem:[#allocation6 + $0x38] sm:$0xf]
    %v1822 = vld [vmem:[#allocation6 + $0x3c] sm:$0xf]
    %v1823 = vld [vmem:[%s5] sm:$0x1]
    %v1825 = vlaneseq
    %v1826 = vshrl.u32 %v1825, 7
    %v1827 = vsub.s32 0, %v1826
    %v1828 = vrot.slane %v1823, %v1827
    %v1846 = vunpack.c.l.b16 %v1807
    %v1847 = vunpack.c.l.b16 %v1808
    %v1848 = vunpack.c.l.b16 %v1809
    %v1849 = vunpack.c.l.b16 %v1810
    %v1850 = vunpack.c.l.b16 %v1811
    %v1851 = vunpack.c.l.b16 %v1812
    %v1852 = vunpack.c.l.b16 %v1813
    %v1853 = vunpack.c.l.b16 %v1814
    %v1854 = vunpack.c.l.b16 %v1815
    %v1855 = vunpack.c.l.b16 %v1816
    %v1856 = vunpack.c.l.b16 %v1817
    %v1857 = vunpack.c.l.b16 %v1818
    %v1858 = vunpack.c.l.b16 %v1819
    %v1859 = vunpack.c.l.b16 %v1820
    %v1860 = vunpack.c.l.b16 %v1821
    %v1861 = vunpack.c.l.b16 %v1822
    %v1862 = vpack.c.b16 %v1847, %v1846
    %v1863 = vpack.c.b16 %v1849, %v1848
    %v1864 = vpack.c.b16 %v1851, %v1850
    %v1865 = vpack.c.b16 %v1853, %v1852
    %v1866 = vpack.c.b16 %v1855, %v1854
    %v1867 = vpack.c.b16 %v1857, %v1856
    %v1868 = vpack.c.b16 %v1859, %v1858
    %v1869 = vpack.c.b16 %v1861, %v1860
    %1878 = vmatprep.subr.bf16.mxu0 0
    %1879 = vmatpush1.bf16.msra.mxu0 %v1869
    %1880 = vmatprep.subr.bf16.mxu0 0
    %1881 = vmatpush1.bf16.msra.mxu0 %v1868
    %1882 = vmatprep.subr.bf16.mxu0 0
    %1883 = vmatpush1.bf16.msra.mxu0 %v1867
    %1884 = vmatprep.subr.bf16.mxu0 0
    %1885 = vmatpush1.bf16.msra.mxu0 %v1866
    %1886 = vmatprep.subr.bf16.mxu0 0
    %1887 = vmatpush1.bf16.msra.mxu0 %v1865
    %1888 = vmatprep.subr.bf16.mxu0 0
    %1889 = vmatpush1.bf16.msra.mxu0 %v1864
    %1890 = vmatprep.subr.bf16.mxu0 0
    %1891 = vmatpush1.bf16.msra.mxu0 %v1863
    %1892 = vmatprep.subr.bf16.mxu0 0
    %1893 = vmatpush1.bf16.msra.mxu0 %v1862
    %1894 = vmatprep.subr.bf16.mxu0 0
    %1895 = vmatpush2.bf16.msra.mxu0 0
    %1896 = vmatprep.subr.bf16.mxu0 0
    %1897 = vmatpush2.bf16.msra.mxu0 0
    %1898 = vmatprep.subr.bf16.mxu0 0
    %1899 = vmatpush2.bf16.msra.mxu0 0
    %1900 = vmatprep.subr.bf16.mxu0 0
    %1901 = vmatpush2.bf16.msra.mxu0 0
    %1902 = vmatprep.subr.bf16.mxu0 0
    %1903 = vmatpush2.bf16.msra.mxu0 0
    %1904 = vmatprep.subr.bf16.mxu0 0
    %1905 = vmatpush2.bf16.msra.mxu0 0
    %1906 = vmatprep.subr.bf16.mxu0 0
    %1907 = vmatpush2.bf16.msra.mxu0 0
    %1908 = vmatprep.subr.bf16.mxu0 0
    %1909 = vmatpush2.bf16.msra.mxu0 0
    %1910 = vmatprep.mubr.bf16.mxu0 0
    %1911 = vmatmul.mubr.bf16.gmra.mxu0 %v1806
    %v1912 = vpop.f32.mrf.mxu0
    %v1913 = vadd.f32 %v1828, %v1912
    %v1914 = vpop.f32.mrf.mxu0
    %v1915 = vpop.f32.mrf.mxu0
    %v1916 = vadd.f32 %v1828, %v1915
    %v1917 = vpop.f32.mrf.mxu0
    %1918 = vdwg.mxu0
    %1919 = vst [vmem:[#allocation12] sm:$0xff] %v1913
    %1920 = vst [vmem:[#allocation12 + $0x8] sm:$0xff] %v1916
    // Predicated region
    $region34: #{tpu_custom_call.1} parent=1 // pred_check
      _
    $region35: #{tpu_custom_call.1} parent=1 // pred_check_branch
      %1922 = sbr.rel (0) target = $region37
    $region36: #{tpu_custom_call.1} parent=1 // pred_region
      %s1924 = ssub.s32 256, 256
      %1925 = vsyncadd [#allocation5], %s1924
      %s1926 = sshll.u32 [#allocation8], 4
      %s1927 = int_to_ptr.vmem [resolvable:$true] %s1926
      %1932 = dma.vmem_to_hbm [thread:$0]  %s1927, 256, %s6, [#allocation5], 128, 128, 8
    $region37: #{tpu_custom_call.1} parent=1 // pred_fallthru
      _
    // Predicated region
    $region38: #{tpu_custom_call.1} parent=1 // pred_check
      _
    $region39: #{tpu_custom_call.1} parent=1 // pred_check_branch
      %1934 = sbr.rel (0) target = $region41
    $region40: #{tpu_custom_call.1} parent=1 // pred_region
      %s1936 = ssub.s32 32, 32
      %1937 = vsyncadd [#allocation10], %s1936
      %s1939 = sshll.u32 [#allocation9], 4
      %s1940 = int_to_ptr.vmem [resolvable:$true] %s1939
      %1942 = dma.vmem_to_hbm [thread:$0]  %s1940, 32, %s7, [#allocation10]
    $region41: #{tpu_custom_call.1} parent=1 // pred_fallthru
      _
    // Predicated region
    $region42: #{tpu_custom_call.1} parent=1 // pred_check
      _
    $region43: #{tpu_custom_call.1} parent=1 // pred_check_branch
      %1944 = sbr.rel (0) target = $region45
    $region44: #{tpu_custom_call.1} parent=1 // pred_region
      %s1946 = ssub.s32 32, 32
      %1947 = vsyncadd [#allocation10], %s1946
      %s1949 = sshll.u32 [#allocation11], 4
      %s1950 = int_to_ptr.vmem [resolvable:$true] %s1949
      %1952 = dma.vmem_to_hbm [thread:$0]  %s1950, 32, %s8, [#allocation10]
    $region45: #{tpu_custom_call.1} parent=1 // pred_fallthru
      _
    // Predicated region
    $region46: #{tpu_custom_call.1} parent=1 // pred_check
      _
    $region47: #{tpu_custom_call.1} parent=1 // pred_check_branch
      %1954 = sbr.rel (0) target = $region49
    $region48: #{tpu_custom_call.1} parent=1 // pred_region
      %s1956 = ssub.s32 256, 256
      %1957 = vsyncadd [#allocation13], %s1956
      %s1958 = sshll.u32 [#allocation12], 4
      %s1959 = int_to_ptr.vmem [resolvable:$true] %s1958
      %1964 = dma.vmem_to_hbm [thread:$0]  %s1959, 256, %s9, [#allocation13], 128, 128, 8
    $region49: #{tpu_custom_call.1} parent=1 // pred_fallthru
      _
    // Predicated region
    $region50: #{tpu_custom_call.1} parent=1 // pred_check
      _
    $region51: #{tpu_custom_call.1} parent=1 // pred_check_branch
      %1966 = sbr.rel (0) target = $region53
    $region52: #{tpu_custom_call.1} parent=1 // pred_region
      %1967 = dma.done [#allocation5], 256
    $region53: #{tpu_custom_call.1} parent=1 // pred_fallthru
      _
    // Predicated region
    $region54: #{tpu_custom_call.1} parent=1 // pred_check
      _
    $region55: #{tpu_custom_call.1} parent=1 // pred_check_branch
      %1969 = sbr.rel (0) target = $region57
    $region56: #{tpu_custom_call.1} parent=1 // pred_region
      %1970 = dma.done [#allocation10], 32
    $region57: #{tpu_custom_call.1} parent=1 // pred_fallthru
      _
    // Predicated region
    $region58: #{tpu_custom_call.1} parent=1 // pred_check
      _
    $region59: #{tpu_custom_call.1} parent=1 // pred_check_branch
      %1972 = sbr.rel (0) target = $region61
    $region60: #{tpu_custom_call.1} parent=1 // pred_region
      %1973 = dma.done [#allocation10], 32
    $region61: #{tpu_custom_call.1} parent=1 // pred_fallthru
      _
    // Predicated region
    $region62: #{tpu_custom_call.1} parent=1 // pred_check
      _
    $region63: #{tpu_custom_call.1} parent=1 // pred_check_branch
      %1975 = sbr.rel (0) target = $region65
    $region64: #{tpu_custom_call.1} parent=1 // pred_region
      %1976 = dma.done [#allocation13], 256
    $region65: #{tpu_custom_call.1} parent=1 // pred_fallthru
      _
    %1977 = vsyncpa [#allocation4], 1
    %1978 = vsyncpa [#allocation7], 1
    %1979 = vsyncpa [#allocation5], 1
    %1980 = vsyncpa [#allocation10], 1
    %1981 = vsyncpa [#allocation13], 1

</llo_original>
